<compile_context>
chip_gen: v6e
topology: v6e:2x2x1
jax: 0.10.0
libtpu: 0.0.40
codegen_flags: <defaults>
</compile_context>

<pallas_src>
import functools

import numpy as np
import jax
import jax.numpy as jnp
from jax.experimental import pallas as pl
from jax.experimental.pallas import tpu as pltpu


# ---------------------------------------------------------------------------
# helpers replicating the PyTorch module's padding / output-size arithmetic
# ---------------------------------------------------------------------------
def _pad_pair(k, s):
    # get_padding_shape's _pad_top_bottom
    pad_along = max(k - s, 0)
    top = pad_along // 2
    return top, pad_along - top


def _pool_out_size(n, k, s):
    # torch.nn.MaxPool3d(kernel, stride, padding=0, dilation=1, ceil_mode=True)
    out = -(-(n - k) // s) + 1
    if (out - 1) * s >= n:          # last window must start inside the input
        out -= 1
    return out


def _is_v5():
    try:
        return "v5" in jax.devices()[0].device_kind.lower()
    except Exception:
        return False


def _pick_channel_block(nc, per_channel_bytes, budget):
    """Largest divisor of nc that fits the VMEM budget, preferring >=2 (even) grid steps."""
    divisors = [d for d in range(1, nc + 1) if nc % d == 0]
    fitting = [d for d in divisors if d * per_channel_bytes <= budget] or [1]
    for pred in (lambda d: (nc // d) >= 2 and (nc // d) % 2 == 0,
                 lambda d: (nc // d) >= 2,
                 lambda d: True):
        cands = [d for d in fitting if pred(d)]
        if cands:
            return max(cands)
    return 1


# ---------------------------------------------------------------------------
# Pallas kernel: fused SAME padding + ceil_mode clipping + separable max pool
# for one leading block of N*C channels, in native (NC, D, H, W) layout.
# ---------------------------------------------------------------------------
def _maxpool_kernel(x_ref, o_ref, *scratch, ks, st, out_sz, win, same_sz, off,
                    in_sz, pad_ext, sentinel):
    kD, kH, kW = ks
    sD, sH, sW = st
    Do, Ho, _ = out_sz
    Wk = win                       # un-subsampled W width written by the kernel
    Dp, Hp, Wp = same_sz           # SAME-padded ("zero") box extents
    oD, oH, oW = off               # top pads actually applied per axis
    D, H, W = in_sz
    Dq, Hq, Wq = pad_ext           # exact tap coverage extents

    if scratch:
        pad_ref = scratch[0]
        cdt = pad_ref.dtype
        LB = pad_ref.shape[0]

        # ---- sentinel shells: ceil_mode overhang beyond the SAME box (thin) ----
        if Dq > Dp:
            pad_ref[:, Dp:Dq, :, :] = jnp.full((LB, Dq - Dp, Hq, Wq), sentinel, cdt)
        if Hq > Hp:
            pad_ref[:, :, Hp:Hq, :] = jnp.full((LB, Dq, Hq - Hp, Wq), sentinel, cdt)
        if Wq > Wp:
            pad_ref[:, :, :, Wp:Wq] = jnp.full((LB, Dq, Hq, Wq - Wp), sentinel, cdt)

        # ---- zero shells: SAME padding (participates in the max, thin slabs) ----
        if oD > 0:
            pad_ref[:, 0:oD, 0:Hp, 0:Wp] = jnp.zeros((LB, oD, Hp, Wp), cdt)
        if oD + D < Dp:
            pad_ref[:, oD + D:Dp, 0:Hp, 0:Wp] = jnp.zeros((LB, Dp - oD - D, Hp, Wp), cdt)
        if oH > 0:
            pad_ref[:, 0:Dp, 0:oH, 0:Wp] = jnp.zeros((LB, Dp, oH, Wp), cdt)
        if oH + H < Hp:
            pad_ref[:, 0:Dp, oH + H:Hp, 0:Wp] = jnp.zeros((LB, Dp, Hp - oH - H, Wp), cdt)
        if oW > 0:
            pad_ref[:, 0:Dp, 0:Hp, 0:oW] = jnp.zeros((LB, Dp, Hp, oW), cdt)
        if oW + W < Wp:
            pad_ref[:, 0:Dp, 0:Hp, oW + W:Wp] = jnp.zeros((LB, Dp, Hp, Wp - oW - W), cdt)

        # ---- interior copy: the single full-volume store pass ----
        # (nonzero oH/oW give shifted/masked stores; correct, only hit by rare configs)
        pad_ref[:, oD:oD + D, oH:oH + H, oW:oW + W] = x_ref[...].astype(cdt)
        src = pad_ref
    else:
        # No padding and no overhang: tap the input block directly, no scratch.
        src = x_ref

    # ---- D & H pooling straight from the ref (strided windows, small temporaries)
    def tap(kd, kh):
        dsl = pl.ds(kd, Do, stride=sD) if sD > 1 else pl.ds(kd, Do)
        hsl = pl.ds(kh, Ho, stride=sH) if sH > 1 else pl.ds(kh, Ho)
        return src[:, dsl, hsl, :]

    acc = tap(0, 0)
    for kd in range(kD):
        for kh in range(kH):
            if kd == 0 and kh == 0:
                continue
            acc = jnp.maximum(acc, tap(kd, kh))          # (LB, Do, Ho, Wq)

    # ---- W windowed max last, on the already D/H-reduced volume (lane offsets)
    r = acc[:, :, :, 0:Wk]
    for kw in range(1, kW):
        r = jnp.maximum(r, acc[:, :, :, kw:kw + Wk])     # (LB, Do, Ho, Wk)

    o_ref[...] = r.astype(o_ref.dtype)


# ---------------------------------------------------------------------------
# wrapper = MaxPool3dTFPadding.forward
# ---------------------------------------------------------------------------
def maxpool3d_tf_padding(x, kernel_size, stride):
    N, C, D, H, W = x.shape
    kD, kH, kW = kernel_size
    sD, sH, sW = stride

    # padding='SAME' via get_padding_shape + ConstantPad3d.  Faithful quirk of the
    # PyTorch module: after the rotation inside get_padding_shape, ConstantPad3d
    # applies the kH-derived pad to the W axis and the kW-derived pad to the H axis.
    pD = _pad_pair(kD, sD)
    pH = _pad_pair(kH, sH)
    pW = _pad_pair(kW, sW)
    padD, padH, padW = pD, pW, pH
    Dp = D + padD[0] + padD[1]
    Hp = H + padH[0] + padH[1]
    Wp = W + padW[0] + padW[1]

    # MaxPool3d(kernel, stride, padding=0, ceil_mode=True) output sizes
    Do = _pool_out_size(Dp, kD, sD)
    Ho = _pool_out_size(Hp, kH, sH)
    Wo = _pool_out_size(Wp, kW, sW)

    # exact tap coverage extents (no slack planes)
    Dq = (Do - 1) * sD + kD
    Hq = (Ho - 1) * sH + kH
    Wq = (Wo - 1) * sW + kW
    Wk = (Wo - 1) * sW + 1          # un-subsampled W width written by the kernel

    oD, oH, oW = padD[0], padH[0], padW[0]
    need_pad = (Dq, Hq, Wq) != (D, H, W) or (oD, oH, oW) != (0, 0, 0)

    # compute / scratch dtype and ceil-overhang sentinel
    if jnp.issubdtype(x.dtype, jnp.floating):
        cdt = x.dtype
        if x.dtype == jnp.bfloat16 and _is_v5():
            cdt = jnp.float32       # v5 VPU has no native bf16; widen the scratch path
        sentinel = float("-inf")
    elif jnp.issubdtype(x.dtype, jnp.integer):
        cdt = x.dtype               # exact integer pooling
        sentinel = int(jnp.iinfo(x.dtype).min)
    else:
        cdt = jnp.float32
        sentinel = float("-inf")

    NC = N * C
    isz = jnp.dtype(x.dtype).itemsize
    csz = jnp.dtype(cdt).itemsize

    # per-channel VMEM footprint per grid step (incl. double buffers & temporaries)
    def tile_bytes(rows, sub, lane, bytesz):
        return rows * (-(-sub // 8) * 8) * (-(-lane // 128) * 128) * bytesz

    per_ch = (2 * tile_bytes(D, H, W, isz)            # double-buffered input block
              + 2 * tile_bytes(Do, Ho, Wk, isz)       # double-buffered output block
              + 3 * tile_bytes(Do, Ho, Wq, csz))      # acc + tap live temporaries
    if need_pad:
        per_ch += tile_bytes(Dq, Hq, Wq, csz)         # padded scratch volume

    try:
        vmem_cap = int(getattr(pltpu.get_tpu_info(), "vmem_capacity_bytes"))
    except Exception:
        vmem_cap = 64 * 1024 * 1024                   # conservative (v7x) fallback
    budget = int(0.4 * vmem_cap)

    LB = _pick_channel_block(NC, per_ch, budget)
    ncb = NC // LB
    vmem_limit = int(min(0.75 * vmem_cap,
                         max(32 * 1024 * 1024, 1.5 * LB * per_ch)))

    # native layout, free reshape (no HBM transpose)
    x5 = x.reshape(NC, D, H, W)

    kern = functools.partial(
        _maxpool_kernel,
        ks=(kD, kH, kW), st=(sD, sH, sW),
        out_sz=(Do, Ho, Wo), win=Wk, same_sz=(Dp, Hp, Wp),
        off=(oD, oH, oW), in_sz=(D, H, W), pad_ext=(Dq, Hq, Wq),
        sentinel=sentinel,
    )

    scratch = [pltpu.VMEM((LB, Dq, Hq, Wq), cdt)] if need_pad else []

    cost = pl.CostEstimate(
        flops=int(NC * Do * Ho * (Wq * (kD * kH - 1) + Wk * (kW - 1))),
        transcendentals=0,
        bytes_accessed=int(x.size * isz + NC * Do * Ho * Wk * isz),
    )

    out_full = pl.pallas_call(
        kern,
        out_shape=jax.ShapeDtypeStruct((NC, Do, Ho, Wk), x.dtype),
        grid_spec=pltpu.PrefetchScalarGridSpec(
            num_scalar_prefetch=0,
            grid=(ncb,),
            in_specs=[pl.BlockSpec((LB, D, H, W), lambda i: (i, 0, 0, 0))],
            out_specs=pl.BlockSpec((LB, Do, Ho, Wk), lambda i: (i, 0, 0, 0)),
            scratch_shapes=scratch,
        ),
        compiler_params=pltpu.CompilerParams(
            dimension_semantics=("parallel",),
            vmem_limit_bytes=vmem_limit,
        ),
        cost_estimate=cost,
    )(x5)

    # stride-sW subsample of the W axis on the small kernel output, then NCDHW shape.
    out5 = out_full if sW == 1 else out_full[:, :, :, ::sW]
    return out5.reshape(N, C, Do, Ho, Wo)


# ---------------------------------------------------------------------------
# pure-numpy reference (replicates the PyTorch module directly)
# ---------------------------------------------------------------------------
def _numpy_ref(x, kernel_size, stride):
    kD, kH, kW = kernel_size
    sD, sH, sW = stride
    pD = _pad_pair(kD, sD)
    pH = _pad_pair(kH, sH)
    pW = _pad_pair(kW, sW)
    xp = np.pad(x, ((0, 0), (0, 0), pD, pW, pH), constant_values=0)
    N, C, Dp, Hp, Wp = xp.shape
    Do = _pool_out_size(Dp, kD, sD)
    Ho = _pool_out_size(Hp, kH, sH)
    Wo = _pool_out_size(Wp, kW, sW)
    out = np.empty((N, C, Do, Ho, Wo), dtype=x.dtype)
    for d in range(Do):
        for h in range(Ho):
            for w in range(Wo):
                sl = xp[:, :,
                        d * sD: min(d * sD + kD, Dp),
                        h * sH: min(h * sH + kH, Hp),
                        w * sW: min(w * sW + kW, Wp)]
                out[:, :, d, h, w] = sl.max(axis=(2, 3, 4))
    return out


if __name__ == "__main__":
    key = jax.random.PRNGKey(0)
    x = jax.random.normal(key, (2, 4, 8, 16, 16), dtype=jnp.float32)

    configs = [
        ((3, 3, 3), (2, 2, 2)),   # S3D-G: pad shells, strided D/H taps, W subsample
        ((2, 2, 2), (2, 2, 2)),   # S3D-G: no-pad fast path (scratch skipped)
        ((1, 3, 3), (1, 2, 2)),   # S3D-G: kD=1 / sD=1 path
        ((1, 3, 5), (1, 2, 2)),   # anisotropic kernel, exercises the H/W pad swap quirk
        ((3, 3, 3), (1, 1, 1)),   # stride 1, nonzero top pads on every axis
    ]

    ok = True
    for ks, st in configs:
        out = jax.block_until_ready(maxpool3d_tf_padding(x, ks, st))
        ref = _numpy_ref(np.asarray(x), ks, st)
        if out.shape != ref.shape or not np.array_equal(np.asarray(out), ref):
            ok = False
            print(f"MISMATCH for kernel_size={ks} stride={st} "
                  f"out={out.shape} ref={ref.shape}")

    # integer inputs (iinfo-min sentinel path, exact — no float round trip)
    xi = jax.random.randint(jax.random.PRNGKey(1), (2, 4, 8, 16, 16),
                            -1000, 1000, dtype=jnp.int32)
    out_i = jax.block_until_ready(maxpool3d_tf_padding(xi, (3, 3, 3), (2, 2, 2)))
    ref_i = _numpy_ref(np.asarray(xi), (3, 3, 3), (2, 2, 2))
    if out_i.shape != ref_i.shape or not np.array_equal(np.asarray(out_i), ref_i):
        ok = False
        print("MISMATCH for int32 input")

    if ok:
        print("KERNEL_OK")
</pallas_src>

<mosaic_0001>
module attributes {stable_mosaic.version = 11 : i64} {
  func.func @_maxpool_kernel(%arg0: i32, %arg1: memref<4x8x16x16xf32, #tpu.memory_space<vmem>>, %arg2: memref<4x4x8x15xf32, #tpu.memory_space<vmem>>, %arg3: memref<4x9x17x17xf32, #tpu.memory_space<vmem>>) attributes {dimension_semantics = [#tpu.dimension_semantics<parallel>], iteration_bounds = array<i64: 2>, scalar_prefetch = 0 : i64, scratch_operands = 1 : i64, tpu.core_type = #tpu.core_type<tc>, window_params = [{transform_indices = @transform_0, window_bounds = array<i64: 4, 8, 16, 16>}, {transform_indices = @transform_1, window_bounds = array<i64: 4, 4, 8, 15>}]} {
    %cst = arith.constant 0.000000e+00 : f32
    %0 = vector.broadcast %cst : f32 to vector<4x1x17x17xf32>
    %c0 = arith.constant 0 : index
    %c8 = arith.constant 8 : index
    %c0_0 = arith.constant 0 : index
    %c0_1 = arith.constant 0 : index
    %1 = vector.load %arg3[%c0, %c8, %c0_0, %c0_1] : memref<4x9x17x17xf32, #tpu.memory_space<vmem>>, vector<4x1x17x17xf32>
    tpu.vector_store %arg3[%c0, %c8, %c0_0, %c0_1], %0 {strides = array<i32>} : memref<4x9x17x17xf32, #tpu.memory_space<vmem>>, vector<4x1x17x17xf32>,
    %cst_2 = arith.constant 0.000000e+00 : f32
    %2 = vector.broadcast %cst_2 : f32 to vector<4x9x1x17xf32>
    %c0_3 = arith.constant 0 : index
    %c0_4 = arith.constant 0 : index
    %c16 = arith.constant 16 : index
    %c0_5 = arith.constant 0 : index
    %3 = vector.load %arg3[%c0_3, %c0_4, %c16, %c0_5] : memref<4x9x17x17xf32, #tpu.memory_space<vmem>>, vector<4x9x1x17xf32>
    tpu.vector_store %arg3[%c0_3, %c0_4, %c16, %c0_5], %2 {strides = array<i32>} : memref<4x9x17x17xf32, #tpu.memory_space<vmem>>, vector<4x9x1x17xf32>,
    %cst_6 = arith.constant 0.000000e+00 : f32
    %4 = vector.broadcast %cst_6 : f32 to vector<4x9x17x1xf32>
    %c0_7 = arith.constant 0 : index
    %c0_8 = arith.constant 0 : index
    %c0_9 = arith.constant 0 : index
    %c16_10 = arith.constant 16 : index
    %5 = vector.load %arg3[%c0_7, %c0_8, %c0_9, %c16_10] : memref<4x9x17x17xf32, #tpu.memory_space<vmem>>, vector<4x9x17x1xf32>
    tpu.vector_store %arg3[%c0_7, %c0_8, %c0_9, %c16_10], %4 {strides = array<i32>} : memref<4x9x17x17xf32, #tpu.memory_space<vmem>>, vector<4x9x17x1xf32>,
    %c0_11 = arith.constant 0 : index
    %c0_12 = arith.constant 0 : index
    %c0_13 = arith.constant 0 : index
    %c0_14 = arith.constant 0 : index
    %6 = vector.load %arg1[%c0_11, %c0_12, %c0_13, %c0_14] : memref<4x8x16x16xf32, #tpu.memory_space<vmem>>, vector<4x8x16x16xf32>
    %c0_15 = arith.constant 0 : index
    %c0_16 = arith.constant 0 : index
    %c0_17 = arith.constant 0 : index
    %c0_18 = arith.constant 0 : index
    %7 = vector.load %arg3[%c0_15, %c0_16, %c0_17, %c0_18] : memref<4x9x17x17xf32, #tpu.memory_space<vmem>>, vector<4x8x16x16xf32>
    tpu.vector_store %arg3[%c0_15, %c0_16, %c0_17, %c0_18], %6 {strides = array<i32>} : memref<4x9x17x17xf32, #tpu.memory_space<vmem>>, vector<4x8x16x16xf32>,
    %c0_19 = arith.constant 0 : index
    %c0_20 = arith.constant 0 : index
    %c0_21 = arith.constant 0 : index
    %c0_22 = arith.constant 0 : index
    %8 = tpu.strided_load %arg3[%c0_19, %c0_20, %c0_21, %c0_22] {strides = array<i32: 1, 2, 2, 1>} : memref<4x9x17x17xf32, #tpu.memory_space<vmem>>, vector<4x4x8x17xf32>
    %c0_23 = arith.constant 0 : index
    %c0_24 = arith.constant 0 : index
    %c1 = arith.constant 1 : index
    %c0_25 = arith.constant 0 : index
    %9 = tpu.strided_load %arg3[%c0_23, %c0_24, %c1, %c0_25] {strides = array<i32: 1, 2, 2, 1>} : memref<4x9x17x17xf32, #tpu.memory_space<vmem>>, vector<4x4x8x17xf32>
    %10 = arith.maximumf %8, %9 : vector<4x4x8x17xf32>
    %c0_26 = arith.constant 0 : index
    %c0_27 = arith.constant 0 : index
    %c2 = arith.constant 2 : index
    %c0_28 = arith.constant 0 : index
    %11 = tpu.strided_load %arg3[%c0_26, %c0_27, %c2, %c0_28] {strides = array<i32: 1, 2, 2, 1>} : memref<4x9x17x17xf32, #tpu.memory_space<vmem>>, vector<4x4x8x17xf32>
    %12 = arith.maximumf %10, %11 : vector<4x4x8x17xf32>
    %c0_29 = arith.constant 0 : index
    %c1_30 = arith.constant 1 : index
    %c0_31 = arith.constant 0 : index
    %c0_32 = arith.constant 0 : index
    %13 = tpu.strided_load %arg3[%c0_29, %c1_30, %c0_31, %c0_32] {strides = array<i32: 1, 2, 2, 1>} : memref<4x9x17x17xf32, #tpu.memory_space<vmem>>, vector<4x4x8x17xf32>
    %14 = arith.maximumf %12, %13 : vector<4x4x8x17xf32>
    %c0_33 = arith.constant 0 : index
    %c1_34 = arith.constant 1 : index
    %c1_35 = arith.constant 1 : index
    %c0_36 = arith.constant 0 : index
    %15 = tpu.strided_load %arg3[%c0_33, %c1_34, %c1_35, %c0_36] {strides = array<i32: 1, 2, 2, 1>} : memref<4x9x17x17xf32, #tpu.memory_space<vmem>>, vector<4x4x8x17xf32>
    %16 = arith.maximumf %14, %15 : vector<4x4x8x17xf32>
    %c0_37 = arith.constant 0 : index
    %c1_38 = arith.constant 1 : index
    %c2_39 = arith.constant 2 : index
    %c0_40 = arith.constant 0 : index
    %17 = tpu.strided_load %arg3[%c0_37, %c1_38, %c2_39, %c0_40] {strides = array<i32: 1, 2, 2, 1>} : memref<4x9x17x17xf32, #tpu.memory_space<vmem>>, vector<4x4x8x17xf32>
    %18 = arith.maximumf %16, %17 : vector<4x4x8x17xf32>
    %c0_41 = arith.constant 0 : index
    %c2_42 = arith.constant 2 : index
    %c0_43 = arith.constant 0 : index
    %c0_44 = arith.constant 0 : index
    %19 = tpu.strided_load %arg3[%c0_41, %c2_42, %c0_43, %c0_44] {strides = array<i32: 1, 2, 2, 1>} : memref<4x9x17x17xf32, #tpu.memory_space<vmem>>, vector<4x4x8x17xf32>
    %20 = arith.maximumf %18, %19 : vector<4x4x8x17xf32>
    %c0_45 = arith.constant 0 : index
    %c2_46 = arith.constant 2 : index
    %c1_47 = arith.constant 1 : index
    %c0_48 = arith.constant 0 : index
    %21 = tpu.strided_load %arg3[%c0_45, %c2_46, %c1_47, %c0_48] {strides = array<i32: 1, 2, 2, 1>} : memref<4x9x17x17xf32, #tpu.memory_space<vmem>>, vector<4x4x8x17xf32>
    %22 = arith.maximumf %20, %21 : vector<4x4x8x17xf32>
    %c0_49 = arith.constant 0 : index
    %c2_50 = arith.constant 2 : index
    %c2_51 = arith.constant 2 : index
    %c0_52 = arith.constant 0 : index
    %23 = tpu.strided_load %arg3[%c0_49, %c2_50, %c2_51, %c0_52] {strides = array<i32: 1, 2, 2, 1>} : memref<4x9x17x17xf32, #tpu.memory_space<vmem>>, vector<4x4x8x17xf32>
    %24 = arith.maximumf %22, %23 : vector<4x4x8x17xf32>
    %25 = vector.extract_strided_slice %24 {offsets = [0, 0, 0, 0], sizes = [4, 4, 8, 15], strides = [1, 1, 1, 1]} : vector<4x4x8x17xf32> to vector<4x4x8x15xf32>
    %26 = vector.extract_strided_slice %24 {offsets = [0, 0, 0, 1], sizes = [4, 4, 8, 15], strides = [1, 1, 1, 1]} : vector<4x4x8x17xf32> to vector<4x4x8x15xf32>
    %27 = arith.maximumf %25, %26 : vector<4x4x8x15xf32>
    %28 = vector.extract_strided_slice %24 {offsets = [0, 0, 0, 2], sizes = [4, 4, 8, 15], strides = [1, 1, 1, 1]} : vector<4x4x8x17xf32> to vector<4x4x8x15xf32>
    %29 = arith.maximumf %27, %28 : vector<4x4x8x15xf32>
    %c0_53 = arith.constant 0 : index
    %c0_54 = arith.constant 0 : index
    %c0_55 = arith.constant 0 : index
    %c0_56 = arith.constant 0 : index
    %30 = vector.load %arg2[%c0_53, %c0_54, %c0_55, %c0_56] : memref<4x4x8x15xf32, #tpu.memory_space<vmem>>, vector<4x4x8x15xf32>
    tpu.vector_store %arg2[%c0_53, %c0_54, %c0_55, %c0_56], %29 {strides = array<i32>} : memref<4x4x8x15xf32, #tpu.memory_space<vmem>>, vector<4x4x8x15xf32>,
    return
  }
  func.func @transform_0(%arg0: i32) -> (i32, i32, i32, i32) {
    %c0_i32 = arith.constant 0 : i32
    %c0_i32_0 = arith.constant 0 : i32
    %c0_i32_1 = arith.constant 0 : i32
    %c0_i32_2 = arith.constant 0 : i32
    return %arg0, %c0_i32, %c0_i32_0, %c0_i32_1 : i32, i32, i32, i32
  }
  func.func @transform_1(%arg0: i32) -> (i32, i32, i32, i32) {
    %c0_i32 = arith.constant 0 : i32
    %c0_i32_0 = arith.constant 0 : i32
    %c0_i32_1 = arith.constant 0 : i32
    %c0_i32_2 = arith.constant 0 : i32
    return %arg0, %c0_i32, %c0_i32_0, %c0_i32_1 : i32, i32, i32, i32
  }
}

</mosaic_0001>

<llo_original>
// kernel: tpu_custom_call.1
$region0: #{tpu_custom_call.1}
  #allocation0 [shape = 'u32[]', space=smem, size = 0x4, offset = 0x4, fixed_abs, tag = 'smem constant byte address 0x4 - core index']
  #allocation1 [shape = 'u32[144,128]{1,0:T(1,128)}', space=vmem, size = 0x12000, scoped, tag = 'internal scratch']
  #allocation2 [shape = 'f32[4,9,17,17]{3,2,1,0:T(8,128)}', space=vmem, size = 0x6c000, scoped, tag = 'scratch operand']
  %s0 = inlined_call_operand.hbm [shape: f32[8,8,16,16], index: 0, kind: input, shape index: {}]
  %s1 = inlined_call_operand.hbm [shape: f32[8,4,8,15], index: 1, kind: output, shape index: {}]
  %s2 = sld [smem:[#allocation0]]
  $region41: #{tpu_custom_call.1} parent=0
    _
  %s4 = ssub.s32 1, %s2
  %s5 = scalar_select 0, %s4, %s2
  $region1: #{tpu_custom_call.1} parent=0
    #allocation3 [shape = 'u8[524288]{0}', space=vmem, size = 0x80000, scoped, tag = 'input window, operand 0']
    #allocation4 [shape = 's32[2]{0}', space=sflag, size = 0x8, scoped, tag = 'scoped memory for tpu_custom_call.1']
    #allocation5 [shape = 's32[2]{0}', space=sflag, size = 0x8, scoped, tag = 'scoped memory for tpu_custom_call.1']
    #allocation6 [shape = 'u8[131072]{0}', space=vmem, size = 0x20000, scoped, tag = 'output window, operand 0']
    %6 = vsyncpa [#allocation4], 0
    %s7 = scalar_lea.sflag [#allocation4], 1
    %8 = vsyncpa %s7, 0
    %9 = vsyncpa [#allocation5], 0
    %s10 = scalar_lea.sflag [#allocation5], 1
    %11 = vsyncpa %s10, 0
    loop: start=0, step=1, limit=4
    $region2: #{tpu_custom_call.1} parent=1 // loop_pre_header
      _
    $region3: #{tpu_custom_call.1} parent=1 // loop_header
      %s13 = sphi 0, %s17
      %p14 = scmp.ge.s32.totalorder %s13, 4
      %s23 = sphi 0, %s25
      %s26 = sphi 0, %s23
      %s27 = sphi 0, %s26
      %s43 = sphi 0, %s27
      %s49 = sphi 0, %s51
      %s52 = sphi 0, %s49
      %s53 = sphi 0, %s52
      %s69 = sphi 0, %s53
    $region4: #{tpu_custom_call.1} parent=1 // loop_header_branch
      %16 = sbr.rel (%p14) target = $region8
    $region5: #{tpu_custom_call.1} parent=1 // loop_body
      %s18 = ssub.s32 %s13, 1
      %s19 = ssub.s32 %s13, 2
      %s20 = sadd.s32 %s13, 1
      %s21 = ssub.s32 %s13, %s20
      %p22 = scmp.eq.s32.totalorder %s21, 0
      %s24 = sadd.s32 %s23, 1
      %s25 = scalar_select %p22, %s23, %s24
      %p28 = pneg %p22
      %p29 = scmp.eq.s32.totalorder %s13, 1
      %p30 = por %p28, %p29
      %p31 = scmp.ne.s32.totalorder %s23, %s26
      %p32 = scmp.eq.s32.totalorder %s13, 0
      %p33 = por %p31, %p32
      %p34 = scmp.ne.s32.totalorder %s23, %s26
      %p35 = scmp.eq.s32.totalorder %s18, 1
      %p36 = por %p34, %p35
      %p37 = scmp.ne.s32.totalorder %s26, %s27
      %p38 = scmp.eq.s32.totalorder %s18, 0
      %p39 = por %p37, %p38
      %p40 = scmp.ne.s32.totalorder %s26, %s27
      %p41 = scmp.eq.s32.totalorder %s19, 1
      %p42 = por %p40, %p41
      %p44 = scmp.ne.s32.totalorder %s27, %s43
      %p45 = scmp.eq.s32.totalorder %s19, 0
      %p46 = por %p44, %p45
      %s47 = ssub.s32 %s13, %s20
      %p48 = scmp.eq.s32.totalorder %s47, 0
      %s50 = sadd.s32 %s49, 1
      %s51 = scalar_select %p48, %s49, %s50
      %p54 = pneg %p48
      %p55 = scmp.eq.s32.totalorder %s13, 1
      %p56 = por %p54, %p55
      %p57 = scmp.ne.s32.totalorder %s49, %s52
      %p58 = scmp.eq.s32.totalorder %s13, 0
      %p59 = por %p57, %p58
      %p60 = scmp.ne.s32.totalorder %s49, %s52
      %p61 = scmp.eq.s32.totalorder %s18, 1
      %p62 = por %p60, %p61
      %p63 = scmp.ne.s32.totalorder %s52, %s53
      %p64 = scmp.eq.s32.totalorder %s18, 0
      %p65 = por %p63, %p64
      %p66 = scmp.ne.s32.totalorder %s52, %s53
      %p67 = scmp.eq.s32.totalorder %s19, 1
      %p68 = por %p66, %p67
      %p70 = scmp.ne.s32.totalorder %s53, %s69
      %p71 = scmp.eq.s32.totalorder %s19, 0
      %p72 = por %p70, %p71
      %p73 = scmp.le.s32.totalorder 1, %s13
      %p74 = scmp.lt.s32.totalorder %s13, 3
      %p75 = pnand %p73, %p74
      %p76 = pneg %p75
      // Predicated region
      $region9: #{tpu_custom_call.1} parent=5 // pred_check
        _
      $region10: #{tpu_custom_call.1} parent=5 // pred_check_branch
        %78 = sbr.rel (%p75) target = $region12
      $region11: #{tpu_custom_call.1} parent=5 // pred_region
        %s79 = ssub.s32 %s13, 1
      $region12: #{tpu_custom_call.1} parent=5 // pred_fallthru
        _
      %p80 = scmp.lt.s32.totalorder %s13, 2
      // Predicated region
      $region13: #{tpu_custom_call.1} parent=5 // pred_check
        %p81 = pneg %p80
      $region14: #{tpu_custom_call.1} parent=5 // pred_check_branch
        %83 = sbr.rel (%p81) target = $region16
      $region15: #{tpu_custom_call.1} parent=5 // pred_region
        // Predicated region
        $region17: #{tpu_custom_call.1} parent=15 // pred_check
          %p84 = pneg %p33
        $region18: #{tpu_custom_call.1} parent=15 // pred_check_branch
          %86 = sbr.rel (%p84) target = $region20
        $region19: #{tpu_custom_call.1} parent=15 // pred_region
          %s87 = sand.u32 %s23, 1
          %s88 = scalar_lea.sflag [#allocation4], %s87
          %s89 = sand.u32 %s23, 1
          %s90 = smul.addr %s89, 512
          %s91 = scalar_lea.vmem [#allocation3], %s90
          %s92 = smul.u32 4, %s13
          %s94 = ssub.s32 8192, 8192
          %95 = vsyncadd %s88, %s94
          %s96 = smul.addr %s92, 16
          %s97 = smul.addr %s96, 128
          %s98 = scalar_lea.hbm %s0, %s97
          %s99 = sshll.u32 %s91, 4
          %s100 = int_to_ptr.vmem [resolvable:$true] %s99
          %105 = dma.hbm_to_vmem [thread:$0]  %s98, 8192, %s100, %s88, 128, 128, 8
        $region20: #{tpu_custom_call.1} parent=15 // pred_fallthru
          _
      $region16: #{tpu_custom_call.1} parent=5 // pred_fallthru
        _
      %p106 = scmp.le.s32.totalorder 1, %s13
      %p107 = scmp.lt.s32.totalorder %s13, 3
      %p108 = pnand %p106, %p107
      %p109 = pneg %p108
      // Predicated region
      $region21: #{tpu_custom_call.1} parent=5 // pred_check
        _
      $region22: #{tpu_custom_call.1} parent=5 // pred_check_branch
        %111 = sbr.rel (%p108) target = $region24
      $region23: #{tpu_custom_call.1} parent=5 // pred_region
        %s112 = ssub.s32 %s13, 1
        %s113 = sand.u32 %s26, 1
        %s114 = scalar_lea.sflag [#allocation4], %s113
        %s115 = sand.u32 %s26, 1
        %s116 = smul.addr %s115, 512
        %s117 = scalar_lea.vmem [#allocation3], %s116
        // Predicated region
        $region25: #{tpu_custom_call.1} parent=23 // pred_check
          %p118 = pneg %p39
        $region26: #{tpu_custom_call.1} parent=23 // pred_check_branch
          %120 = sbr.rel (%p118) target = $region28
        $region27: #{tpu_custom_call.1} parent=23 // pred_region
          %121 = dma.done %s114, 8192
        $region28: #{tpu_custom_call.1} parent=23 // pred_fallthru
          _
        %s122 = sand.u32 %s26, 1
        %s123 = scalar_lea.sflag [#allocation4], %s122
        %s124 = sand.u32 %s26, 1
        %s125 = smul.addr %s124, 512
        %s126 = scalar_lea.vmem [#allocation3], %s125
        %p127 = pneg %p39
        %p128 = pneg %p36
        %p129 = pneg %p65
        %p130 = pneg %p62
        %s131 = sand.u32 %s52, 1
        %s132 = scalar_lea.sflag [#allocation5], %s131
        %s133 = sand.u32 %s52, 1
        %s134 = smul.addr %s133, 128
        %s135 = scalar_lea.vmem [#allocation6], %s134
        %s136 = smul.u32 4, %s18
        %s137 = smul.u32 4, %s18
        %s138 = scalar_lea.vmem [#allocation2], 192
        %vm139 = vcmask 138240
        %140 = vst.msk [vmem:[%s138] sm:$0xff] %vm139, 0.0
        %141 = vst.msk [vmem:[%s138 + $0x8] sm:$0xff] %vm139, 0.0
        %vm142 = vcmask 131072
        %143 = vst.msk [vmem:[%s138 + $0x10] sm:$0x1] %vm142, 0.0
        %144 = vst.msk [vmem:[%s138 + $0xd8] sm:$0xff] %vm139, 0.0
        %145 = vst.msk [vmem:[%s138 + $0xe0] sm:$0xff] %vm139, 0.0
        %146 = vst.msk [vmem:[%s138 + $0xe8] sm:$0x1] %vm142, 0.0
        %147 = vst.msk [vmem:[%s138 + $0x1b0] sm:$0xff] %vm139, 0.0
        %148 = vst.msk [vmem:[%s138 + $0x1b8] sm:$0xff] %vm139, 0.0
        %149 = vst.msk [vmem:[%s138 + $0x1c0] sm:$0x1] %vm142, 0.0
        %150 = vst.msk [vmem:[%s138 + $0x288] sm:$0xff] %vm139, 0.0
        %151 = vst.msk [vmem:[%s138 + $0x290] sm:$0xff] %vm139, 0.0
        %152 = vst.msk [vmem:[%s138 + $0x298] sm:$0x1] %vm142, 0.0
        %153 = vst.msk [vmem:[#allocation2 + $0x10] sm:$0x1] %vm142, 0.0
        %154 = vst.msk [vmem:[#allocation2 + $0x28] sm:$0x1] %vm142, 0.0
        %155 = vst.msk [vmem:[#allocation2 + $0x40] sm:$0x1] %vm142, 0.0
        %156 = vst.msk [vmem:[#allocation2 + $0x58] sm:$0x1] %vm142, 0.0
        %157 = vst.msk [vmem:[#allocation2 + $0x70] sm:$0x1] %vm142, 0.0
        %158 = vst.msk [vmem:[#allocation2 + $0x88] sm:$0x1] %vm142, 0.0
        %159 = vst.msk [vmem:[#allocation2 + $0xa0] sm:$0x1] %vm142, 0.0
        %160 = vst.msk [vmem:[#allocation2 + $0xb8] sm:$0x1] %vm142, 0.0
        %161 = vst.msk [vmem:[#allocation2 + $0xd0] sm:$0x1] %vm142, 0.0
        %162 = vst.msk [vmem:[#allocation2 + $0xe8] sm:$0x1] %vm142, 0.0
        %163 = vst.msk [vmem:[#allocation2 + $0x100] sm:$0x1] %vm142, 0.0
        %164 = vst.msk [vmem:[#allocation2 + $0x118] sm:$0x1] %vm142, 0.0
        %165 = vst.msk [vmem:[#allocation2 + $0x130] sm:$0x1] %vm142, 0.0
        %166 = vst.msk [vmem:[#allocation2 + $0x148] sm:$0x1] %vm142, 0.0
        %167 = vst.msk [vmem:[#allocation2 + $0x160] sm:$0x1] %vm142, 0.0
        %168 = vst.msk [vmem:[#allocation2 + $0x178] sm:$0x1] %vm142, 0.0
        %169 = vst.msk [vmem:[#allocation2 + $0x190] sm:$0x1] %vm142, 0.0
        %170 = vst.msk [vmem:[#allocation2 + $0x1a8] sm:$0x1] %vm142, 0.0
        %171 = vst.msk [vmem:[#allocation2 + $0x1c0] sm:$0x1] %vm142, 0.0
        %172 = vst.msk [vmem:[#allocation2 + $0x1d8] sm:$0x1] %vm142, 0.0
        %173 = vst.msk [vmem:[#allocation2 + $0x1f0] sm:$0x1] %vm142, 0.0
        %174 = vst.msk [vmem:[#allocation2 + $0x208] sm:$0x1] %vm142, 0.0
        %175 = vst.msk [vmem:[#allocation2 + $0x220] sm:$0x1] %vm142, 0.0
        %176 = vst.msk [vmem:[#allocation2 + $0x238] sm:$0x1] %vm142, 0.0
        %177 = vst.msk [vmem:[#allocation2 + $0x250] sm:$0x1] %vm142, 0.0
        %178 = vst.msk [vmem:[#allocation2 + $0x268] sm:$0x1] %vm142, 0.0
        %179 = vst.msk [vmem:[#allocation2 + $0x280] sm:$0x1] %vm142, 0.0
        %180 = vst.msk [vmem:[#allocation2 + $0x298] sm:$0x1] %vm142, 0.0
        %181 = vst.msk [vmem:[#allocation2 + $0x2b0] sm:$0x1] %vm142, 0.0
        %182 = vst.msk [vmem:[#allocation2 + $0x2c8] sm:$0x1] %vm142, 0.0
        %183 = vst.msk [vmem:[#allocation2 + $0x2e0] sm:$0x1] %vm142, 0.0
        %184 = vst.msk [vmem:[#allocation2 + $0x2f8] sm:$0x1] %vm142, 0.0
        %185 = vst.msk [vmem:[#allocation2 + $0x310] sm:$0x1] %vm142, 0.0
        %186 = vst.msk [vmem:[#allocation2 + $0x328] sm:$0x1] %vm142, 0.0
        %187 = vst.msk [vmem:[#allocation2 + $0x340] sm:$0x1] %vm142, 0.0
        %188 = vst.msk [vmem:[#allocation2 + $0x358] sm:$0x1] %vm142, 0.0
        %vm189 = vcmask 138368
        %190 = vst.msk [vmem:[#allocation2] sm:$0xff] %vm189, 0.0
        %191 = vst.msk [vmem:[#allocation2 + $0x8] sm:$0xff] %vm189, 0.0
        %vm192 = vcmask 131200
        %193 = vst.msk [vmem:[#allocation2 + $0x10] sm:$0x1] %vm192, 0.0
        %194 = vst.msk [vmem:[#allocation2 + $0x18] sm:$0xff] %vm189, 0.0
        %195 = vst.msk [vmem:[#allocation2 + $0x20] sm:$0xff] %vm189, 0.0
        %196 = vst.msk [vmem:[#allocation2 + $0x28] sm:$0x1] %vm192, 0.0
        %197 = vst.msk [vmem:[#allocation2 + $0x30] sm:$0xff] %vm189, 0.0
        %198 = vst.msk [vmem:[#allocation2 + $0x38] sm:$0xff] %vm189, 0.0
        %199 = vst.msk [vmem:[#allocation2 + $0x40] sm:$0x1] %vm192, 0.0
        %200 = vst.msk [vmem:[#allocation2 + $0x48] sm:$0xff] %vm189, 0.0
        %201 = vst.msk [vmem:[#allocation2 + $0x50] sm:$0xff] %vm189, 0.0
        %202 = vst.msk [vmem:[#allocation2 + $0x58] sm:$0x1] %vm192, 0.0
        %203 = vst.msk [vmem:[#allocation2 + $0x60] sm:$0xff] %vm189, 0.0
        %204 = vst.msk [vmem:[#allocation2 + $0x68] sm:$0xff] %vm189, 0.0
        %205 = vst.msk [vmem:[#allocation2 + $0x70] sm:$0x1] %vm192, 0.0
        %206 = vst.msk [vmem:[#allocation2 + $0x78] sm:$0xff] %vm189, 0.0
        %207 = vst.msk [vmem:[#allocation2 + $0x80] sm:$0xff] %vm189, 0.0
        %208 = vst.msk [vmem:[#allocation2 + $0x88] sm:$0x1] %vm192, 0.0
        %209 = vst.msk [vmem:[#allocation2 + $0x90] sm:$0xff] %vm189, 0.0
        %210 = vst.msk [vmem:[#allocation2 + $0x98] sm:$0xff] %vm189, 0.0
        %211 = vst.msk [vmem:[#allocation2 + $0xa0] sm:$0x1] %vm192, 0.0
        %212 = vst.msk [vmem:[#allocation2 + $0xa8] sm:$0xff] %vm189, 0.0
        %213 = vst.msk [vmem:[#allocation2 + $0xb0] sm:$0xff] %vm189, 0.0
        %214 = vst.msk [vmem:[#allocation2 + $0xb8] sm:$0x1] %vm192, 0.0
        %215 = vst.msk [vmem:[#allocation2 + $0xc0] sm:$0xff] %vm189, 0.0
        %216 = vst.msk [vmem:[#allocation2 + $0xc8] sm:$0xff] %vm189, 0.0
        %217 = vst.msk [vmem:[#allocation2 + $0xd0] sm:$0x1] %vm192, 0.0
        %218 = vst.msk [vmem:[#allocation2 + $0xd8] sm:$0xff] %vm189, 0.0
        %219 = vst.msk [vmem:[#allocation2 + $0xe0] sm:$0xff] %vm189, 0.0
        %220 = vst.msk [vmem:[#allocation2 + $0xe8] sm:$0x1] %vm192, 0.0
        %221 = vst.msk [vmem:[#allocation2 + $0xf0] sm:$0xff] %vm189, 0.0
        %222 = vst.msk [vmem:[#allocation2 + $0xf8] sm:$0xff] %vm189, 0.0
        %223 = vst.msk [vmem:[#allocation2 + $0x100] sm:$0x1] %vm192, 0.0
        %224 = vst.msk [vmem:[#allocation2 + $0x108] sm:$0xff] %vm189, 0.0
        %225 = vst.msk [vmem:[#allocation2 + $0x110] sm:$0xff] %vm189, 0.0
        %226 = vst.msk [vmem:[#allocation2 + $0x118] sm:$0x1] %vm192, 0.0
        %227 = vst.msk [vmem:[#allocation2 + $0x120] sm:$0xff] %vm189, 0.0
        %228 = vst.msk [vmem:[#allocation2 + $0x128] sm:$0xff] %vm189, 0.0
        %229 = vst.msk [vmem:[#allocation2 + $0x130] sm:$0x1] %vm192, 0.0
        %230 = vst.msk [vmem:[#allocation2 + $0x138] sm:$0xff] %vm189, 0.0
        %231 = vst.msk [vmem:[#allocation2 + $0x140] sm:$0xff] %vm189, 0.0
        %232 = vst.msk [vmem:[#allocation2 + $0x148] sm:$0x1] %vm192, 0.0
        %233 = vst.msk [vmem:[#allocation2 + $0x150] sm:$0xff] %vm189, 0.0
        %234 = vst.msk [vmem:[#allocation2 + $0x158] sm:$0xff] %vm189, 0.0
        %235 = vst.msk [vmem:[#allocation2 + $0x160] sm:$0x1] %vm192, 0.0
        %236 = vst.msk [vmem:[#allocation2 + $0x168] sm:$0xff] %vm189, 0.0
        %237 = vst.msk [vmem:[#allocation2 + $0x170] sm:$0xff] %vm189, 0.0
        %238 = vst.msk [vmem:[#allocation2 + $0x178] sm:$0x1] %vm192, 0.0
        %239 = vst.msk [vmem:[#allocation2 + $0x180] sm:$0xff] %vm189, 0.0
        %240 = vst.msk [vmem:[#allocation2 + $0x188] sm:$0xff] %vm189, 0.0
        %241 = vst.msk [vmem:[#allocation2 + $0x190] sm:$0x1] %vm192, 0.0
        %242 = vst.msk [vmem:[#allocation2 + $0x198] sm:$0xff] %vm189, 0.0
        %243 = vst.msk [vmem:[#allocation2 + $0x1a0] sm:$0xff] %vm189, 0.0
        %244 = vst.msk [vmem:[#allocation2 + $0x1a8] sm:$0x1] %vm192, 0.0
        %245 = vst.msk [vmem:[#allocation2 + $0x1b0] sm:$0xff] %vm189, 0.0
        %246 = vst.msk [vmem:[#allocation2 + $0x1b8] sm:$0xff] %vm189, 0.0
        %247 = vst.msk [vmem:[#allocation2 + $0x1c0] sm:$0x1] %vm192, 0.0
        %248 = vst.msk [vmem:[#allocation2 + $0x1c8] sm:$0xff] %vm189, 0.0
        %249 = vst.msk [vmem:[#allocation2 + $0x1d0] sm:$0xff] %vm189, 0.0
        %250 = vst.msk [vmem:[#allocation2 + $0x1d8] sm:$0x1] %vm192, 0.0
        %251 = vst.msk [vmem:[#allocation2 + $0x1e0] sm:$0xff] %vm189, 0.0
        %252 = vst.msk [vmem:[#allocation2 + $0x1e8] sm:$0xff] %vm189, 0.0
        %253 = vst.msk [vmem:[#allocation2 + $0x1f0] sm:$0x1] %vm192, 0.0
        %254 = vst.msk [vmem:[#allocation2 + $0x1f8] sm:$0xff] %vm189, 0.0
        %255 = vst.msk [vmem:[#allocation2 + $0x200] sm:$0xff] %vm189, 0.0
        %256 = vst.msk [vmem:[#allocation2 + $0x208] sm:$0x1] %vm192, 0.0
        %257 = vst.msk [vmem:[#allocation2 + $0x210] sm:$0xff] %vm189, 0.0
        %258 = vst.msk [vmem:[#allocation2 + $0x218] sm:$0xff] %vm189, 0.0
        %259 = vst.msk [vmem:[#allocation2 + $0x220] sm:$0x1] %vm192, 0.0
        %260 = vst.msk [vmem:[#allocation2 + $0x228] sm:$0xff] %vm189, 0.0
        %261 = vst.msk [vmem:[#allocation2 + $0x230] sm:$0xff] %vm189, 0.0
        %262 = vst.msk [vmem:[#allocation2 + $0x238] sm:$0x1] %vm192, 0.0
        %263 = vst.msk [vmem:[#allocation2 + $0x240] sm:$0xff] %vm189, 0.0
        %264 = vst.msk [vmem:[#allocation2 + $0x248] sm:$0xff] %vm189, 0.0
        %265 = vst.msk [vmem:[#allocation2 + $0x250] sm:$0x1] %vm192, 0.0
        %266 = vst.msk [vmem:[#allocation2 + $0x258] sm:$0xff] %vm189, 0.0
        %267 = vst.msk [vmem:[#allocation2 + $0x260] sm:$0xff] %vm189, 0.0
        %268 = vst.msk [vmem:[#allocation2 + $0x268] sm:$0x1] %vm192, 0.0
        %269 = vst.msk [vmem:[#allocation2 + $0x270] sm:$0xff] %vm189, 0.0
        %270 = vst.msk [vmem:[#allocation2 + $0x278] sm:$0xff] %vm189, 0.0
        %271 = vst.msk [vmem:[#allocation2 + $0x280] sm:$0x1] %vm192, 0.0
        %272 = vst.msk [vmem:[#allocation2 + $0x288] sm:$0xff] %vm189, 0.0
        %273 = vst.msk [vmem:[#allocation2 + $0x290] sm:$0xff] %vm189, 0.0
        %274 = vst.msk [vmem:[#allocation2 + $0x298] sm:$0x1] %vm192, 0.0
        %275 = vst.msk [vmem:[#allocation2 + $0x2a0] sm:$0xff] %vm189, 0.0
        %276 = vst.msk [vmem:[#allocation2 + $0x2a8] sm:$0xff] %vm189, 0.0
        %277 = vst.msk [vmem:[#allocation2 + $0x2b0] sm:$0x1] %vm192, 0.0
        %278 = vst.msk [vmem:[#allocation2 + $0x2b8] sm:$0xff] %vm189, 0.0
        %279 = vst.msk [vmem:[#allocation2 + $0x2c0] sm:$0xff] %vm189, 0.0
        %280 = vst.msk [vmem:[#allocation2 + $0x2c8] sm:$0x1] %vm192, 0.0
        %281 = vst.msk [vmem:[#allocation2 + $0x2d0] sm:$0xff] %vm189, 0.0
        %282 = vst.msk [vmem:[#allocation2 + $0x2d8] sm:$0xff] %vm189, 0.0
        %283 = vst.msk [vmem:[#allocation2 + $0x2e0] sm:$0x1] %vm192, 0.0
        %284 = vst.msk [vmem:[#allocation2 + $0x2e8] sm:$0xff] %vm189, 0.0
        %285 = vst.msk [vmem:[#allocation2 + $0x2f0] sm:$0xff] %vm189, 0.0
        %286 = vst.msk [vmem:[#allocation2 + $0x2f8] sm:$0x1] %vm192, 0.0
        %287 = vst.msk [vmem:[#allocation2 + $0x300] sm:$0xff] %vm189, 0.0
        %288 = vst.msk [vmem:[#allocation2 + $0x308] sm:$0xff] %vm189, 0.0
        %289 = vst.msk [vmem:[#allocation2 + $0x310] sm:$0x1] %vm192, 0.0
        %290 = vst.msk [vmem:[#allocation2 + $0x318] sm:$0xff] %vm189, 0.0
        %291 = vst.msk [vmem:[#allocation2 + $0x320] sm:$0xff] %vm189, 0.0
        %292 = vst.msk [vmem:[#allocation2 + $0x328] sm:$0x1] %vm192, 0.0
        %293 = vst.msk [vmem:[#allocation2 + $0x330] sm:$0xff] %vm189, 0.0
        %294 = vst.msk [vmem:[#allocation2 + $0x338] sm:$0xff] %vm189, 0.0
        %295 = vst.msk [vmem:[#allocation2 + $0x340] sm:$0x1] %vm192, 0.0
        %296 = vst.msk [vmem:[#allocation2 + $0x348] sm:$0xff] %vm189, 0.0
        %297 = vst.msk [vmem:[#allocation2 + $0x350] sm:$0xff] %vm189, 0.0
        %298 = vst.msk [vmem:[#allocation2 + $0x358] sm:$0x1] %vm192, 0.0
        %v299 = vld [vmem:[%s117] sm:$0xff]
        %v300 = vld [vmem:[%s117 + $0x8] sm:$0xff]
        %v301 = vld [vmem:[%s117 + $0x10] sm:$0xff]
        %v302 = vld [vmem:[%s117 + $0x18] sm:$0xff]
        %v303 = vld [vmem:[%s117 + $0x20] sm:$0xff]
        %v304 = vld [vmem:[%s117 + $0x28] sm:$0xff]
        %v305 = vld [vmem:[%s117 + $0x30] sm:$0xff]
        %v306 = vld [vmem:[%s117 + $0x38] sm:$0xff]
        %v307 = vld [vmem:[%s117 + $0x40] sm:$0xff]
        %v308 = vld [vmem:[%s117 + $0x48] sm:$0xff]
        %v309 = vld [vmem:[%s117 + $0x50] sm:$0xff]
        %v310 = vld [vmem:[%s117 + $0x58] sm:$0xff]
        %v311 = vld [vmem:[%s117 + $0x60] sm:$0xff]
        %v312 = vld [vmem:[%s117 + $0x68] sm:$0xff]
        %v313 = vld [vmem:[%s117 + $0x70] sm:$0xff]
        %v314 = vld [vmem:[%s117 + $0x78] sm:$0xff]
        %v315 = vld [vmem:[%s117 + $0x80] sm:$0xff]
        %v316 = vld [vmem:[%s117 + $0x88] sm:$0xff]
        %v317 = vld [vmem:[%s117 + $0x90] sm:$0xff]
        %v318 = vld [vmem:[%s117 + $0x98] sm:$0xff]
        %v319 = vld [vmem:[%s117 + $0xa0] sm:$0xff]
        %v320 = vld [vmem:[%s117 + $0xa8] sm:$0xff]
        %v321 = vld [vmem:[%s117 + $0xb0] sm:$0xff]
        %v322 = vld [vmem:[%s117 + $0xb8] sm:$0xff]
        %v323 = vld [vmem:[%s117 + $0xc0] sm:$0xff]
        %v324 = vld [vmem:[%s117 + $0xc8] sm:$0xff]
        %v325 = vld [vmem:[%s117 + $0xd0] sm:$0xff]
        %v326 = vld [vmem:[%s117 + $0xd8] sm:$0xff]
        %v327 = vld [vmem:[%s117 + $0xe0] sm:$0xff]
        %v328 = vld [vmem:[%s117 + $0xe8] sm:$0xff]
        %v329 = vld [vmem:[%s117 + $0xf0] sm:$0xff]
        %v330 = vld [vmem:[%s117 + $0xf8] sm:$0xff]
        %v331 = vld [vmem:[%s117 + $0x100] sm:$0xff]
        %v332 = vld [vmem:[%s117 + $0x108] sm:$0xff]
        %v333 = vld [vmem:[%s117 + $0x110] sm:$0xff]
        %v334 = vld [vmem:[%s117 + $0x118] sm:$0xff]
        %v335 = vld [vmem:[%s117 + $0x120] sm:$0xff]
        %v336 = vld [vmem:[%s117 + $0x128] sm:$0xff]
        %v337 = vld [vmem:[%s117 + $0x130] sm:$0xff]
        %v338 = vld [vmem:[%s117 + $0x138] sm:$0xff]
        %v339 = vld [vmem:[%s117 + $0x140] sm:$0xff]
        %v340 = vld [vmem:[%s117 + $0x148] sm:$0xff]
        %v341 = vld [vmem:[%s117 + $0x150] sm:$0xff]
        %v342 = vld [vmem:[%s117 + $0x158] sm:$0xff]
        %v343 = vld [vmem:[%s117 + $0x160] sm:$0xff]
        %v344 = vld [vmem:[%s117 + $0x168] sm:$0xff]
        %v345 = vld [vmem:[%s117 + $0x170] sm:$0xff]
        %v346 = vld [vmem:[%s117 + $0x178] sm:$0xff]
        %v347 = vld [vmem:[%s117 + $0x180] sm:$0xff]
        %v348 = vld [vmem:[%s117 + $0x188] sm:$0xff]
        %v349 = vld [vmem:[%s117 + $0x190] sm:$0xff]
        %v350 = vld [vmem:[%s117 + $0x198] sm:$0xff]
        %v351 = vld [vmem:[%s117 + $0x1a0] sm:$0xff]
        %v352 = vld [vmem:[%s117 + $0x1a8] sm:$0xff]
        %v353 = vld [vmem:[%s117 + $0x1b0] sm:$0xff]
        %v354 = vld [vmem:[%s117 + $0x1b8] sm:$0xff]
        %v355 = vld [vmem:[%s117 + $0x1c0] sm:$0xff]
        %v356 = vld [vmem:[%s117 + $0x1c8] sm:$0xff]
        %v357 = vld [vmem:[%s117 + $0x1d0] sm:$0xff]
        %v358 = vld [vmem:[%s117 + $0x1d8] sm:$0xff]
        %v359 = vld [vmem:[%s117 + $0x1e0] sm:$0xff]
        %v360 = vld [vmem:[%s117 + $0x1e8] sm:$0xff]
        %v361 = vld [vmem:[%s117 + $0x1f0] sm:$0xff]
        %v362 = vld [vmem:[%s117 + $0x1f8] sm:$0xff]
        %vm363 = vcmask 130048
        %364 = vst.msk [vmem:[#allocation2] sm:$0xff] %vm363, %v299
        %365 = vst.msk [vmem:[#allocation2 + $0x8] sm:$0xff] %vm363, %v300
        %366 = vst.msk [vmem:[#allocation2 + $0x18] sm:$0xff] %vm363, %v301
        %367 = vst.msk [vmem:[#allocation2 + $0x20] sm:$0xff] %vm363, %v302
        %368 = vst.msk [vmem:[#allocation2 + $0x30] sm:$0xff] %vm363, %v303
        %369 = vst.msk [vmem:[#allocation2 + $0x38] sm:$0xff] %vm363, %v304
        %370 = vst.msk [vmem:[#allocation2 + $0x48] sm:$0xff] %vm363, %v305
        %371 = vst.msk [vmem:[#allocation2 + $0x50] sm:$0xff] %vm363, %v306
        %372 = vst.msk [vmem:[#allocation2 + $0x60] sm:$0xff] %vm363, %v307
        %373 = vst.msk [vmem:[#allocation2 + $0x68] sm:$0xff] %vm363, %v308
        %374 = vst.msk [vmem:[#allocation2 + $0x78] sm:$0xff] %vm363, %v309
        %375 = vst.msk [vmem:[#allocation2 + $0x80] sm:$0xff] %vm363, %v310
        %376 = vst.msk [vmem:[#allocation2 + $0x90] sm:$0xff] %vm363, %v311
        %377 = vst.msk [vmem:[#allocation2 + $0x98] sm:$0xff] %vm363, %v312
        %378 = vst.msk [vmem:[#allocation2 + $0xa8] sm:$0xff] %vm363, %v313
        %379 = vst.msk [vmem:[#allocation2 + $0xb0] sm:$0xff] %vm363, %v314
        %380 = vst.msk [vmem:[#allocation2 + $0xd8] sm:$0xff] %vm363, %v315
        %381 = vst.msk [vmem:[#allocation2 + $0xe0] sm:$0xff] %vm363, %v316
        %382 = vst.msk [vmem:[#allocation2 + $0xf0] sm:$0xff] %vm363, %v317
        %383 = vst.msk [vmem:[#allocation2 + $0xf8] sm:$0xff] %vm363, %v318
        %384 = vst.msk [vmem:[#allocation2 + $0x108] sm:$0xff] %vm363, %v319
        %385 = vst.msk [vmem:[#allocation2 + $0x110] sm:$0xff] %vm363, %v320
        %386 = vst.msk [vmem:[#allocation2 + $0x120] sm:$0xff] %vm363, %v321
        %387 = vst.msk [vmem:[#allocation2 + $0x128] sm:$0xff] %vm363, %v322
        %388 = vst.msk [vmem:[#allocation2 + $0x138] sm:$0xff] %vm363, %v323
        %389 = vst.msk [vmem:[#allocation2 + $0x140] sm:$0xff] %vm363, %v324
        %390 = vst.msk [vmem:[#allocation2 + $0x150] sm:$0xff] %vm363, %v325
        %391 = vst.msk [vmem:[#allocation2 + $0x158] sm:$0xff] %vm363, %v326
        %392 = vst.msk [vmem:[#allocation2 + $0x168] sm:$0xff] %vm363, %v327
        %393 = vst.msk [vmem:[#allocation2 + $0x170] sm:$0xff] %vm363, %v328
        %394 = vst.msk [vmem:[#allocation2 + $0x180] sm:$0xff] %vm363, %v329
        %395 = vst.msk [vmem:[#allocation2 + $0x188] sm:$0xff] %vm363, %v330
        %396 = vst.msk [vmem:[#allocation2 + $0x1b0] sm:$0xff] %vm363, %v331
        %397 = vst.msk [vmem:[#allocation2 + $0x1b8] sm:$0xff] %vm363, %v332
        %398 = vst.msk [vmem:[#allocation2 + $0x1c8] sm:$0xff] %vm363, %v333
        %399 = vst.msk [vmem:[#allocation2 + $0x1d0] sm:$0xff] %vm363, %v334
        %400 = vst.msk [vmem:[#allocation2 + $0x1e0] sm:$0xff] %vm363, %v335
        %401 = vst.msk [vmem:[#allocation2 + $0x1e8] sm:$0xff] %vm363, %v336
        %402 = vst.msk [vmem:[#allocation2 + $0x1f8] sm:$0xff] %vm363, %v337
        %403 = vst.msk [vmem:[#allocation2 + $0x200] sm:$0xff] %vm363, %v338
        %404 = vst.msk [vmem:[#allocation2 + $0x210] sm:$0xff] %vm363, %v339
        %405 = vst.msk [vmem:[#allocation2 + $0x218] sm:$0xff] %vm363, %v340
        %406 = vst.msk [vmem:[#allocation2 + $0x228] sm:$0xff] %vm363, %v341
        %407 = vst.msk [vmem:[#allocation2 + $0x230] sm:$0xff] %vm363, %v342
        %408 = vst.msk [vmem:[#allocation2 + $0x240] sm:$0xff] %vm363, %v343
        %409 = vst.msk [vmem:[#allocation2 + $0x248] sm:$0xff] %vm363, %v344
        %410 = vst.msk [vmem:[#allocation2 + $0x258] sm:$0xff] %vm363, %v345
        %411 = vst.msk [vmem:[#allocation2 + $0x260] sm:$0xff] %vm363, %v346
        %412 = vst.msk [vmem:[#allocation2 + $0x288] sm:$0xff] %vm363, %v347
        %413 = vst.msk [vmem:[#allocation2 + $0x290] sm:$0xff] %vm363, %v348
        %414 = vst.msk [vmem:[#allocation2 + $0x2a0] sm:$0xff] %vm363, %v349
        %415 = vst.msk [vmem:[#allocation2 + $0x2a8] sm:$0xff] %vm363, %v350
        %416 = vst.msk [vmem:[#allocation2 + $0x2b8] sm:$0xff] %vm363, %v351
        %417 = vst.msk [vmem:[#allocation2 + $0x2c0] sm:$0xff] %vm363, %v352
        %418 = vst.msk [vmem:[#allocation2 + $0x2d0] sm:$0xff] %vm363, %v353
        %419 = vst.msk [vmem:[#allocation2 + $0x2d8] sm:$0xff] %vm363, %v354
        %420 = vst.msk [vmem:[#allocation2 + $0x2e8] sm:$0xff] %vm363, %v355
        %421 = vst.msk [vmem:[#allocation2 + $0x2f0] sm:$0xff] %vm363, %v356
        %422 = vst.msk [vmem:[#allocation2 + $0x300] sm:$0xff] %vm363, %v357
        %423 = vst.msk [vmem:[#allocation2 + $0x308] sm:$0xff] %vm363, %v358
        %424 = vst.msk [vmem:[#allocation2 + $0x318] sm:$0xff] %vm363, %v359
        %425 = vst.msk [vmem:[#allocation2 + $0x320] sm:$0xff] %vm363, %v360
        %426 = vst.msk [vmem:[#allocation2 + $0x330] sm:$0xff] %vm363, %v361
        %427 = vst.msk [vmem:[#allocation2 + $0x338] sm:$0xff] %vm363, %v362
        %v428 = vld [vmem:[#allocation2] ss:$2 sm:$0xff]
        %s429 = scalar_lea.vmem [#allocation2], 48
        %v430 = vld [vmem:[%s429] ss:$2 sm:$0xff]
        %s431 = scalar_lea.vmem [#allocation2], 96
        %v432 = vld [vmem:[%s431] ss:$2 sm:$0xff]
        %s433 = scalar_lea.vmem [#allocation2], 144
        %v434 = vld [vmem:[%s433] ss:$2 sm:$0xff]
        %s435 = scalar_lea.vmem [#allocation2], 216
        %v436 = vld [vmem:[%s435] ss:$2 sm:$0xff]
        %s437 = scalar_lea.vmem [#allocation2], 264
        %v438 = vld [vmem:[%s437] ss:$2 sm:$0xff]
        %s439 = scalar_lea.vmem [#allocation2], 312
        %v440 = vld [vmem:[%s439] ss:$2 sm:$0xff]
        %s441 = scalar_lea.vmem [#allocation2], 360
        %v442 = vld [vmem:[%s441] ss:$2 sm:$0xff]
        %s443 = scalar_lea.vmem [#allocation2], 432
        %v444 = vld [vmem:[%s443] ss:$2 sm:$0xff]
        %s445 = scalar_lea.vmem [#allocation2], 480
        %v446 = vld [vmem:[%s445] ss:$2 sm:$0xff]
        %s447 = scalar_lea.vmem [#allocation2], 528
        %v448 = vld [vmem:[%s447] ss:$2 sm:$0xff]
        %s449 = scalar_lea.vmem [#allocation2], 576
        %v450 = vld [vmem:[%s449] ss:$2 sm:$0xff]
        %s451 = scalar_lea.vmem [#allocation2], 648
        %v452 = vld [vmem:[%s451] ss:$2 sm:$0xff]
        %s453 = scalar_lea.vmem [#allocation2], 696
        %v454 = vld [vmem:[%s453] ss:$2 sm:$0xff]
        %s455 = scalar_lea.vmem [#allocation2], 744
        %v456 = vld [vmem:[%s455] ss:$2 sm:$0xff]
        %s457 = scalar_lea.vmem [#allocation2], 792
        %v458 = vld [vmem:[%s457] ss:$2 sm:$0xff]
        %s459 = scalar_lea.vmem [#allocation2], 1
        %v460 = vld [vmem:[%s459] ss:$2 sm:$0xff]
        %s461 = scalar_lea.vmem [#allocation2], 49
        %v462 = vld [vmem:[%s461] ss:$2 sm:$0xff]
        %s463 = scalar_lea.vmem [#allocation2], 97
        %v464 = vld [vmem:[%s463] ss:$2 sm:$0xff]
        %s465 = scalar_lea.vmem [#allocation2], 145
        %v466 = vld [vmem:[%s465] ss:$2 sm:$0xff]
        %s467 = scalar_lea.vmem [#allocation2], 217
        %v468 = vld [vmem:[%s467] ss:$2 sm:$0xff]
        %s469 = scalar_lea.vmem [#allocation2], 265
        %v470 = vld [vmem:[%s469] ss:$2 sm:$0xff]
        %s471 = scalar_lea.vmem [#allocation2], 313
        %v472 = vld [vmem:[%s471] ss:$2 sm:$0xff]
        %s473 = scalar_lea.vmem [#allocation2], 361
        %v474 = vld [vmem:[%s473] ss:$2 sm:$0xff]
        %s475 = scalar_lea.vmem [#allocation2], 433
        %v476 = vld [vmem:[%s475] ss:$2 sm:$0xff]
        %s477 = scalar_lea.vmem [#allocation2], 481
        %v478 = vld [vmem:[%s477] ss:$2 sm:$0xff]
        %s479 = scalar_lea.vmem [#allocation2], 529
        %v480 = vld [vmem:[%s479] ss:$2 sm:$0xff]
        %s481 = scalar_lea.vmem [#allocation2], 577
        %v482 = vld [vmem:[%s481] ss:$2 sm:$0xff]
        %s483 = scalar_lea.vmem [#allocation2], 649
        %v484 = vld [vmem:[%s483] ss:$2 sm:$0xff]
        %s485 = scalar_lea.vmem [#allocation2], 697
        %v486 = vld [vmem:[%s485] ss:$2 sm:$0xff]
        %s487 = scalar_lea.vmem [#allocation2], 745
        %v488 = vld [vmem:[%s487] ss:$2 sm:$0xff]
        %s489 = scalar_lea.vmem [#allocation2], 793
        %v490 = vld [vmem:[%s489] ss:$2 sm:$0xff]
        %v491 = vmax.f32 %v428, %v460
        %v492 = vmax.f32 %v430, %v462
        %v493 = vmax.f32 %v432, %v464
        %v494 = vmax.f32 %v434, %v466
        %v495 = vmax.f32 %v436, %v468
        %v496 = vmax.f32 %v438, %v470
        %v497 = vmax.f32 %v440, %v472
        %v498 = vmax.f32 %v442, %v474
        %v499 = vmax.f32 %v444, %v476
        %v500 = vmax.f32 %v446, %v478
        %v501 = vmax.f32 %v448, %v480
        %v502 = vmax.f32 %v450, %v482
        %v503 = vmax.f32 %v452, %v484
        %v504 = vmax.f32 %v454, %v486
        %v505 = vmax.f32 %v456, %v488
        %v506 = vmax.f32 %v458, %v490
        %s507 = scalar_lea.vmem [#allocation2], 2
        %v508 = vld [vmem:[%s507] ss:$2 sm:$0xff]
        %s509 = scalar_lea.vmem [#allocation2], 50
        %v510 = vld [vmem:[%s509] ss:$2 sm:$0xff]
        %s511 = scalar_lea.vmem [#allocation2], 98
        %v512 = vld [vmem:[%s511] ss:$2 sm:$0xff]
        %s513 = scalar_lea.vmem [#allocation2], 146
        %v514 = vld [vmem:[%s513] ss:$2 sm:$0xff]
        %s515 = scalar_lea.vmem [#allocation2], 218
        %v516 = vld [vmem:[%s515] ss:$2 sm:$0xff]
        %s517 = scalar_lea.vmem [#allocation2], 266
        %v518 = vld [vmem:[%s517] ss:$2 sm:$0xff]
        %s519 = scalar_lea.vmem [#allocation2], 314
        %v520 = vld [vmem:[%s519] ss:$2 sm:$0xff]
        %s521 = scalar_lea.vmem [#allocation2], 362
        %v522 = vld [vmem:[%s521] ss:$2 sm:$0xff]
        %s523 = scalar_lea.vmem [#allocation2], 434
        %v524 = vld [vmem:[%s523] ss:$2 sm:$0xff]
        %s525 = scalar_lea.vmem [#allocation2], 482
        %v526 = vld [vmem:[%s525] ss:$2 sm:$0xff]
        %s527 = scalar_lea.vmem [#allocation2], 530
        %v528 = vld [vmem:[%s527] ss:$2 sm:$0xff]
        %s529 = scalar_lea.vmem [#allocation2], 578
        %v530 = vld [vmem:[%s529] ss:$2 sm:$0xff]
        %s531 = scalar_lea.vmem [#allocation2], 650
        %v532 = vld [vmem:[%s531] ss:$2 sm:$0xff]
        %s533 = scalar_lea.vmem [#allocation2], 698
        %v534 = vld [vmem:[%s533] ss:$2 sm:$0xff]
        %s535 = scalar_lea.vmem [#allocation2], 746
        %v536 = vld [vmem:[%s535] ss:$2 sm:$0xff]
        %s537 = scalar_lea.vmem [#allocation2], 794
        %v538 = vld [vmem:[%s537] ss:$2 sm:$0xff]
        %v539 = vmax.f32 %v491, %v508
        %v540 = vmax.f32 %v492, %v510
        %v541 = vmax.f32 %v493, %v512
        %v542 = vmax.f32 %v494, %v514
        %v543 = vmax.f32 %v495, %v516
        %v544 = vmax.f32 %v496, %v518
        %v545 = vmax.f32 %v497, %v520
        %v546 = vmax.f32 %v498, %v522
        %v547 = vmax.f32 %v499, %v524
        %v548 = vmax.f32 %v500, %v526
        %v549 = vmax.f32 %v501, %v528
        %v550 = vmax.f32 %v502, %v530
        %v551 = vmax.f32 %v503, %v532
        %v552 = vmax.f32 %v504, %v534
        %v553 = vmax.f32 %v505, %v536
        %v554 = vmax.f32 %v506, %v538
        %s555 = scalar_lea.vmem [#allocation2], 24
        %v556 = vld [vmem:[%s555] ss:$2 sm:$0xff]
        %s557 = scalar_lea.vmem %s555, 48 [#allocation2]
        %v558 = vld [vmem:[%s557] ss:$2 sm:$0xff]
        %s559 = scalar_lea.vmem %s555, 96 [#allocation2]
        %v560 = vld [vmem:[%s559] ss:$2 sm:$0xff]
        %s561 = scalar_lea.vmem %s555, 144 [#allocation2]
        %v562 = vld [vmem:[%s561] ss:$2 sm:$0xff]
        %s563 = scalar_lea.vmem %s555, 216 [#allocation2]
        %v564 = vld [vmem:[%s563] ss:$2 sm:$0xff]
        %s565 = scalar_lea.vmem %s555, 264 [#allocation2]
        %v566 = vld [vmem:[%s565] ss:$2 sm:$0xff]
        %s567 = scalar_lea.vmem %s555, 312 [#allocation2]
        %v568 = vld [vmem:[%s567] ss:$2 sm:$0xff]
        %s569 = scalar_lea.vmem %s555, 360 [#allocation2]
        %v570 = vld [vmem:[%s569] ss:$2 sm:$0xff]
        %s571 = scalar_lea.vmem %s555, 432 [#allocation2]
        %v572 = vld [vmem:[%s571] ss:$2 sm:$0xff]
        %s573 = scalar_lea.vmem %s555, 480 [#allocation2]
        %v574 = vld [vmem:[%s573] ss:$2 sm:$0xff]
        %s575 = scalar_lea.vmem %s555, 528 [#allocation2]
        %v576 = vld [vmem:[%s575] ss:$2 sm:$0xff]
        %s577 = scalar_lea.vmem %s555, 576 [#allocation2]
        %v578 = vld [vmem:[%s577] ss:$2 sm:$0xff]
        %s579 = scalar_lea.vmem %s555, 648 [#allocation2]
        %v580 = vld [vmem:[%s579] ss:$2 sm:$0xff]
        %s581 = scalar_lea.vmem %s555, 696 [#allocation2]
        %v582 = vld [vmem:[%s581] ss:$2 sm:$0xff]
        %s583 = scalar_lea.vmem %s555, 744 [#allocation2]
        %v584 = vld [vmem:[%s583] ss:$2 sm:$0xff]
        %s585 = scalar_lea.vmem %s555, 792 [#allocation2]
        %v586 = vld [vmem:[%s585] ss:$2 sm:$0xff]
        %v587 = vmax.f32 %v539, %v556
        %v588 = vmax.f32 %v540, %v558
        %v589 = vmax.f32 %v541, %v560
        %v590 = vmax.f32 %v542, %v562
        %v591 = vmax.f32 %v543, %v564
        %v592 = vmax.f32 %v544, %v566
        %v593 = vmax.f32 %v545, %v568
        %v594 = vmax.f32 %v546, %v570
        %v595 = vmax.f32 %v547, %v572
        %v596 = vmax.f32 %v548, %v574
        %v597 = vmax.f32 %v549, %v576
        %v598 = vmax.f32 %v550, %v578
        %v599 = vmax.f32 %v551, %v580
        %v600 = vmax.f32 %v552, %v582
        %v601 = vmax.f32 %v553, %v584
        %v602 = vmax.f32 %v554, %v586
        %s603 = scalar_lea.vmem %s555, 1 [#allocation2]
        %v604 = vld [vmem:[%s603] ss:$2 sm:$0xff]
        %s605 = scalar_lea.vmem %s555, 49 [#allocation2]
        %v606 = vld [vmem:[%s605] ss:$2 sm:$0xff]
        %s607 = scalar_lea.vmem %s555, 97 [#allocation2]
        %v608 = vld [vmem:[%s607] ss:$2 sm:$0xff]
        %s609 = scalar_lea.vmem %s555, 145 [#allocation2]
        %v610 = vld [vmem:[%s609] ss:$2 sm:$0xff]
        %s611 = scalar_lea.vmem %s555, 217 [#allocation2]
        %v612 = vld [vmem:[%s611] ss:$2 sm:$0xff]
        %s613 = scalar_lea.vmem %s555, 265 [#allocation2]
        %v614 = vld [vmem:[%s613] ss:$2 sm:$0xff]
        %s615 = scalar_lea.vmem %s555, 313 [#allocation2]
        %v616 = vld [vmem:[%s615] ss:$2 sm:$0xff]
        %s617 = scalar_lea.vmem %s555, 361 [#allocation2]
        %v618 = vld [vmem:[%s617] ss:$2 sm:$0xff]
        %s619 = scalar_lea.vmem %s555, 433 [#allocation2]
        %v620 = vld [vmem:[%s619] ss:$2 sm:$0xff]
        %s621 = scalar_lea.vmem %s555, 481 [#allocation2]
        %v622 = vld [vmem:[%s621] ss:$2 sm:$0xff]
        %s623 = scalar_lea.vmem %s555, 529 [#allocation2]
        %v624 = vld [vmem:[%s623] ss:$2 sm:$0xff]
        %s625 = scalar_lea.vmem %s555, 577 [#allocation2]
        %v626 = vld [vmem:[%s625] ss:$2 sm:$0xff]
        %s627 = scalar_lea.vmem %s555, 649 [#allocation2]
        %v628 = vld [vmem:[%s627] ss:$2 sm:$0xff]
        %s629 = scalar_lea.vmem %s555, 697 [#allocation2]
        %v630 = vld [vmem:[%s629] ss:$2 sm:$0xff]
        %s631 = scalar_lea.vmem %s555, 745 [#allocation2]
        %v632 = vld [vmem:[%s631] ss:$2 sm:$0xff]
        %s633 = scalar_lea.vmem %s555, 793 [#allocation2]
        %v634 = vld [vmem:[%s633] ss:$2 sm:$0xff]
        %v635 = vmax.f32 %v587, %v604
        %v636 = vmax.f32 %v588, %v606
        %v637 = vmax.f32 %v589, %v608
        %v638 = vmax.f32 %v590, %v610
        %v639 = vmax.f32 %v591, %v612
        %v640 = vmax.f32 %v592, %v614
        %v641 = vmax.f32 %v593, %v616
        %v642 = vmax.f32 %v594, %v618
        %v643 = vmax.f32 %v595, %v620
        %v644 = vmax.f32 %v596, %v622
        %v645 = vmax.f32 %v597, %v624
        %v646 = vmax.f32 %v598, %v626
        %v647 = vmax.f32 %v599, %v628
        %v648 = vmax.f32 %v600, %v630
        %v649 = vmax.f32 %v601, %v632
        %v650 = vmax.f32 %v602, %v634
        %s651 = scalar_lea.vmem %s555, 2 [#allocation2]
        %v652 = vld [vmem:[%s651] ss:$2 sm:$0xff]
        %s653 = scalar_lea.vmem %s555, 50 [#allocation2]
        %v654 = vld [vmem:[%s653] ss:$2 sm:$0xff]
        %s655 = scalar_lea.vmem %s555, 98 [#allocation2]
        %v656 = vld [vmem:[%s655] ss:$2 sm:$0xff]
        %s657 = scalar_lea.vmem %s555, 146 [#allocation2]
        %v658 = vld [vmem:[%s657] ss:$2 sm:$0xff]
        %s659 = scalar_lea.vmem %s555, 218 [#allocation2]
        %v660 = vld [vmem:[%s659] ss:$2 sm:$0xff]
        %s661 = scalar_lea.vmem %s555, 266 [#allocation2]
        %v662 = vld [vmem:[%s661] ss:$2 sm:$0xff]
        %s663 = scalar_lea.vmem %s555, 314 [#allocation2]
        %v664 = vld [vmem:[%s663] ss:$2 sm:$0xff]
        %s665 = scalar_lea.vmem %s555, 362 [#allocation2]
        %v666 = vld [vmem:[%s665] ss:$2 sm:$0xff]
        %s667 = scalar_lea.vmem %s555, 434 [#allocation2]
        %v668 = vld [vmem:[%s667] ss:$2 sm:$0xff]
        %s669 = scalar_lea.vmem %s555, 482 [#allocation2]
        %v670 = vld [vmem:[%s669] ss:$2 sm:$0xff]
        %s671 = scalar_lea.vmem %s555, 530 [#allocation2]
        %v672 = vld [vmem:[%s671] ss:$2 sm:$0xff]
        %s673 = scalar_lea.vmem %s555, 578 [#allocation2]
        %v674 = vld [vmem:[%s673] ss:$2 sm:$0xff]
        %s675 = scalar_lea.vmem %s555, 650 [#allocation2]
        %v676 = vld [vmem:[%s675] ss:$2 sm:$0xff]
        %s677 = scalar_lea.vmem %s555, 698 [#allocation2]
        %v678 = vld [vmem:[%s677] ss:$2 sm:$0xff]
        %s679 = scalar_lea.vmem %s555, 746 [#allocation2]
        %v680 = vld [vmem:[%s679] ss:$2 sm:$0xff]
        %s681 = scalar_lea.vmem %s555, 794 [#allocation2]
        %v682 = vld [vmem:[%s681] ss:$2 sm:$0xff]
        %v683 = vmax.f32 %v635, %v652
        %v684 = vmax.f32 %v636, %v654
        %v685 = vmax.f32 %v637, %v656
        %v686 = vmax.f32 %v638, %v658
        %v687 = vmax.f32 %v639, %v660
        %v688 = vmax.f32 %v640, %v662
        %v689 = vmax.f32 %v641, %v664
        %v690 = vmax.f32 %v642, %v666
        %v691 = vmax.f32 %v643, %v668
        %v692 = vmax.f32 %v644, %v670
        %v693 = vmax.f32 %v645, %v672
        %v694 = vmax.f32 %v646, %v674
        %v695 = vmax.f32 %v647, %v676
        %v696 = vmax.f32 %v648, %v678
        %v697 = vmax.f32 %v649, %v680
        %v698 = vmax.f32 %v650, %v682
        %s699 = scalar_lea.vmem [#allocation2], 48
        %v700 = vld [vmem:[%s699] ss:$2 sm:$0xff]
        %s701 = scalar_lea.vmem %s699, 48 [#allocation2]
        %v702 = vld [vmem:[%s701] ss:$2 sm:$0xff]
        %s703 = scalar_lea.vmem %s699, 96 [#allocation2]
        %v704 = vld [vmem:[%s703] ss:$2 sm:$0xff]
        %s705 = scalar_lea.vmem %s699, 144 [#allocation2]
        %v706 = vld [vmem:[%s705] ss:$2 sm:$0xff]
        %s707 = scalar_lea.vmem %s699, 216 [#allocation2]
        %v708 = vld [vmem:[%s707] ss:$2 sm:$0xff]
        %s709 = scalar_lea.vmem %s699, 264 [#allocation2]
        %v710 = vld [vmem:[%s709] ss:$2 sm:$0xff]
        %s711 = scalar_lea.vmem %s699, 312 [#allocation2]
        %v712 = vld [vmem:[%s711] ss:$2 sm:$0xff]
        %s713 = scalar_lea.vmem %s699, 360 [#allocation2]
        %v714 = vld [vmem:[%s713] ss:$2 sm:$0xff]
        %s715 = scalar_lea.vmem %s699, 432 [#allocation2]
        %v716 = vld [vmem:[%s715] ss:$2 sm:$0xff]
        %s717 = scalar_lea.vmem %s699, 480 [#allocation2]
        %v718 = vld [vmem:[%s717] ss:$2 sm:$0xff]
        %s719 = scalar_lea.vmem %s699, 528 [#allocation2]
        %v720 = vld [vmem:[%s719] ss:$2 sm:$0xff]
        %s721 = scalar_lea.vmem %s699, 576 [#allocation2]
        %v722 = vld [vmem:[%s721] ss:$2 sm:$0xff]
        %s723 = scalar_lea.vmem %s699, 648 [#allocation2]
        %v724 = vld [vmem:[%s723] ss:$2 sm:$0xff]
        %s725 = scalar_lea.vmem %s699, 696 [#allocation2]
        %v726 = vld [vmem:[%s725] ss:$2 sm:$0xff]
        %s727 = scalar_lea.vmem %s699, 744 [#allocation2]
        %v728 = vld [vmem:[%s727] ss:$2 sm:$0xff]
        %s729 = scalar_lea.vmem %s699, 792 [#allocation2]
        %v730 = vld [vmem:[%s729] ss:$2 sm:$0xff]
        %v731 = vmax.f32 %v683, %v700
        %v732 = vmax.f32 %v684, %v702
        %v733 = vmax.f32 %v685, %v704
        %v734 = vmax.f32 %v686, %v706
        %v735 = vmax.f32 %v687, %v708
        %v736 = vmax.f32 %v688, %v710
        %v737 = vmax.f32 %v689, %v712
        %v738 = vmax.f32 %v690, %v714
        %v739 = vmax.f32 %v691, %v716
        %v740 = vmax.f32 %v692, %v718
        %v741 = vmax.f32 %v693, %v720
        %v742 = vmax.f32 %v694, %v722
        %v743 = vmax.f32 %v695, %v724
        %v744 = vmax.f32 %v696, %v726
        %v745 = vmax.f32 %v697, %v728
        %v746 = vmax.f32 %v698, %v730
        %s747 = scalar_lea.vmem %s699, 1 [#allocation2]
        %v748 = vld [vmem:[%s747] ss:$2 sm:$0xff]
        %s749 = scalar_lea.vmem %s699, 49 [#allocation2]
        %v750 = vld [vmem:[%s749] ss:$2 sm:$0xff]
        %s751 = scalar_lea.vmem %s699, 97 [#allocation2]
        %v752 = vld [vmem:[%s751] ss:$2 sm:$0xff]
        %s753 = scalar_lea.vmem %s699, 145 [#allocation2]
        %v754 = vld [vmem:[%s753] ss:$2 sm:$0xff]
        %s755 = scalar_lea.vmem %s699, 217 [#allocation2]
        %v756 = vld [vmem:[%s755] ss:$2 sm:$0xff]
        %s757 = scalar_lea.vmem %s699, 265 [#allocation2]
        %v758 = vld [vmem:[%s757] ss:$2 sm:$0xff]
        %s759 = scalar_lea.vmem %s699, 313 [#allocation2]
        %v760 = vld [vmem:[%s759] ss:$2 sm:$0xff]
        %s761 = scalar_lea.vmem %s699, 361 [#allocation2]
        %v762 = vld [vmem:[%s761] ss:$2 sm:$0xff]
        %s763 = scalar_lea.vmem %s699, 433 [#allocation2]
        %v764 = vld [vmem:[%s763] ss:$2 sm:$0xff]
        %s765 = scalar_lea.vmem %s699, 481 [#allocation2]
        %v766 = vld [vmem:[%s765] ss:$2 sm:$0xff]
        %s767 = scalar_lea.vmem %s699, 529 [#allocation2]
        %v768 = vld [vmem:[%s767] ss:$2 sm:$0xff]
        %s769 = scalar_lea.vmem %s699, 577 [#allocation2]
        %v770 = vld [vmem:[%s769] ss:$2 sm:$0xff]
        %s771 = scalar_lea.vmem %s699, 649 [#allocation2]
        %v772 = vld [vmem:[%s771] ss:$2 sm:$0xff]
        %s773 = scalar_lea.vmem %s699, 697 [#allocation2]
        %v774 = vld [vmem:[%s773] ss:$2 sm:$0xff]
        %s775 = scalar_lea.vmem %s699, 745 [#allocation2]
        %v776 = vld [vmem:[%s775] ss:$2 sm:$0xff]
        %s777 = scalar_lea.vmem %s699, 793 [#allocation2]
        %v778 = vld [vmem:[%s777] ss:$2 sm:$0xff]
        %v779 = vmax.f32 %v731, %v748
        %v780 = vmax.f32 %v732, %v750
        %v781 = vmax.f32 %v733, %v752
        %v782 = vmax.f32 %v734, %v754
        %v783 = vmax.f32 %v735, %v756
        %v784 = vmax.f32 %v736, %v758
        %v785 = vmax.f32 %v737, %v760
        %v786 = vmax.f32 %v738, %v762
        %v787 = vmax.f32 %v739, %v764
        %v788 = vmax.f32 %v740, %v766
        %v789 = vmax.f32 %v741, %v768
        %v790 = vmax.f32 %v742, %v770
        %v791 = vmax.f32 %v743, %v772
        %v792 = vmax.f32 %v744, %v774
        %v793 = vmax.f32 %v745, %v776
        %v794 = vmax.f32 %v746, %v778
        %s795 = scalar_lea.vmem %s699, 2 [#allocation2]
        %v796 = vld [vmem:[%s795] ss:$2 sm:$0xff]
        %s797 = scalar_lea.vmem %s699, 50 [#allocation2]
        %v798 = vld [vmem:[%s797] ss:$2 sm:$0xff]
        %s799 = scalar_lea.vmem %s699, 98 [#allocation2]
        %v800 = vld [vmem:[%s799] ss:$2 sm:$0xff]
        %s801 = scalar_lea.vmem %s699, 146 [#allocation2]
        %v802 = vld [vmem:[%s801] ss:$2 sm:$0xff]
        %s803 = scalar_lea.vmem %s699, 218 [#allocation2]
        %v804 = vld [vmem:[%s803] ss:$2 sm:$0xff]
        %s805 = scalar_lea.vmem %s699, 266 [#allocation2]
        %v806 = vld [vmem:[%s805] ss:$2 sm:$0xff]
        %s807 = scalar_lea.vmem %s699, 314 [#allocation2]
        %v808 = vld [vmem:[%s807] ss:$2 sm:$0xff]
        %s809 = scalar_lea.vmem %s699, 362 [#allocation2]
        %v810 = vld [vmem:[%s809] ss:$2 sm:$0xff]
        %s811 = scalar_lea.vmem %s699, 434 [#allocation2]
        %v812 = vld [vmem:[%s811] ss:$2 sm:$0xff]
        %s813 = scalar_lea.vmem %s699, 482 [#allocation2]
        %v814 = vld [vmem:[%s813] ss:$2 sm:$0xff]
        %s815 = scalar_lea.vmem %s699, 530 [#allocation2]
        %v816 = vld [vmem:[%s815] ss:$2 sm:$0xff]
        %s817 = scalar_lea.vmem %s699, 578 [#allocation2]
        %v818 = vld [vmem:[%s817] ss:$2 sm:$0xff]
        %s819 = scalar_lea.vmem %s699, 650 [#allocation2]
        %v820 = vld [vmem:[%s819] ss:$2 sm:$0xff]
        %s821 = scalar_lea.vmem %s699, 698 [#allocation2]
        %v822 = vld [vmem:[%s821] ss:$2 sm:$0xff]
        %s823 = scalar_lea.vmem %s699, 746 [#allocation2]
        %v824 = vld [vmem:[%s823] ss:$2 sm:$0xff]
        %s825 = scalar_lea.vmem %s699, 794 [#allocation2]
        %v826 = vld [vmem:[%s825] ss:$2 sm:$0xff]
        %v827 = vmax.f32 %v779, %v796
        %v828 = vmax.f32 %v780, %v798
        %v829 = vmax.f32 %v781, %v800
        %v830 = vmax.f32 %v782, %v802
        %v831 = vmax.f32 %v783, %v804
        %v832 = vmax.f32 %v784, %v806
        %v833 = vmax.f32 %v785, %v808
        %v834 = vmax.f32 %v786, %v810
        %v835 = vmax.f32 %v787, %v812
        %v836 = vmax.f32 %v788, %v814
        %v837 = vmax.f32 %v789, %v816
        %v838 = vmax.f32 %v790, %v818
        %v839 = vmax.f32 %v791, %v820
        %v840 = vmax.f32 %v792, %v822
        %v841 = vmax.f32 %v793, %v824
        %v842 = vmax.f32 %v794, %v826
        %859 = vrot.lane.b32.xlu0 %v827, 127
        %v860 = vpop.permute.xlu0 %859
        %861 = vrot.lane.b32.xlu0 %v828, 127
        %v862 = vpop.permute.xlu0 %861
        %863 = vrot.lane.b32.xlu0 %v829, 127
        %v864 = vpop.permute.xlu0 %863
        %865 = vrot.lane.b32.xlu0 %v830, 127
        %v866 = vpop.permute.xlu0 %865
        %867 = vrot.lane.b32.xlu0 %v831, 127
        %v868 = vpop.permute.xlu0 %867
        %869 = vrot.lane.b32.xlu0 %v832, 127
        %v870 = vpop.permute.xlu0 %869
        %871 = vrot.lane.b32.xlu0 %v833, 127
        %v872 = vpop.permute.xlu0 %871
        %873 = vrot.lane.b32.xlu0 %v834, 127
        %v874 = vpop.permute.xlu0 %873
        %875 = vrot.lane.b32.xlu0 %v835, 127
        %v876 = vpop.permute.xlu0 %875
        %877 = vrot.lane.b32.xlu0 %v836, 127
        %v878 = vpop.permute.xlu0 %877
        %879 = vrot.lane.b32.xlu0 %v837, 127
        %v880 = vpop.permute.xlu0 %879
        %881 = vrot.lane.b32.xlu0 %v838, 127
        %v882 = vpop.permute.xlu0 %881
        %883 = vrot.lane.b32.xlu0 %v839, 127
        %v884 = vpop.permute.xlu0 %883
        %885 = vrot.lane.b32.xlu0 %v840, 127
        %v886 = vpop.permute.xlu0 %885
        %887 = vrot.lane.b32.xlu0 %v841, 127
        %v888 = vpop.permute.xlu0 %887
        %889 = vrot.lane.b32.xlu0 %v842, 127
        %v890 = vpop.permute.xlu0 %889
        %v907 = vmax.f32 %v827, %v860
        %v908 = vmax.f32 %v828, %v862
        %v909 = vmax.f32 %v829, %v864
        %v910 = vmax.f32 %v830, %v866
        %v911 = vmax.f32 %v831, %v868
        %v912 = vmax.f32 %v832, %v870
        %v913 = vmax.f32 %v833, %v872
        %v914 = vmax.f32 %v834, %v874
        %v915 = vmax.f32 %v835, %v876
        %v916 = vmax.f32 %v836, %v878
        %v917 = vmax.f32 %v837, %v880
        %v918 = vmax.f32 %v838, %v882
        %v919 = vmax.f32 %v839, %v884
        %v920 = vmax.f32 %v840, %v886
        %v921 = vmax.f32 %v841, %v888
        %v922 = vmax.f32 %v842, %v890
        %923 = vrot.lane.b32.xlu0 %v827, 126
        %v924 = vpop.permute.xlu0 %923
        %925 = vrot.lane.b32.xlu0 %v828, 126
        %v926 = vpop.permute.xlu0 %925
        %927 = vrot.lane.b32.xlu0 %v829, 126
        %v928 = vpop.permute.xlu0 %927
        %929 = vrot.lane.b32.xlu0 %v830, 126
        %v930 = vpop.permute.xlu0 %929
        %931 = vrot.lane.b32.xlu0 %v831, 126
        %v932 = vpop.permute.xlu0 %931
        %933 = vrot.lane.b32.xlu0 %v832, 126
        %v934 = vpop.permute.xlu0 %933
        %935 = vrot.lane.b32.xlu0 %v833, 126
        %v936 = vpop.permute.xlu0 %935
        %937 = vrot.lane.b32.xlu0 %v834, 126
        %v938 = vpop.permute.xlu0 %937
        %939 = vrot.lane.b32.xlu0 %v835, 126
        %v940 = vpop.permute.xlu0 %939
        %941 = vrot.lane.b32.xlu0 %v836, 126
        %v942 = vpop.permute.xlu0 %941
        %943 = vrot.lane.b32.xlu0 %v837, 126
        %v944 = vpop.permute.xlu0 %943
        %945 = vrot.lane.b32.xlu0 %v838, 126
        %v946 = vpop.permute.xlu0 %945
        %947 = vrot.lane.b32.xlu0 %v839, 126
        %v948 = vpop.permute.xlu0 %947
        %949 = vrot.lane.b32.xlu0 %v840, 126
        %v950 = vpop.permute.xlu0 %949
        %951 = vrot.lane.b32.xlu0 %v841, 126
        %v952 = vpop.permute.xlu0 %951
        %953 = vrot.lane.b32.xlu0 %v842, 126
        %v954 = vpop.permute.xlu0 %953
        %v971 = vmax.f32 %v907, %v924
        %v972 = vmax.f32 %v908, %v926
        %v973 = vmax.f32 %v909, %v928
        %v974 = vmax.f32 %v910, %v930
        %v975 = vmax.f32 %v911, %v932
        %v976 = vmax.f32 %v912, %v934
        %v977 = vmax.f32 %v913, %v936
        %v978 = vmax.f32 %v914, %v938
        %v979 = vmax.f32 %v915, %v940
        %v980 = vmax.f32 %v916, %v942
        %v981 = vmax.f32 %v917, %v944
        %v982 = vmax.f32 %v918, %v946
        %v983 = vmax.f32 %v919, %v948
        %v984 = vmax.f32 %v920, %v950
        %v985 = vmax.f32 %v921, %v952
        %v986 = vmax.f32 %v922, %v954
        %vm987 = vcmask 121856
        %988 = vst.msk [vmem:[%s135] sm:$0xff] %vm987, %v971
        %989 = vst.msk [vmem:[%s135 + $0x8] sm:$0xff] %vm987, %v972
        %990 = vst.msk [vmem:[%s135 + $0x10] sm:$0xff] %vm987, %v973
        %991 = vst.msk [vmem:[%s135 + $0x18] sm:$0xff] %vm987, %v974
        %992 = vst.msk [vmem:[%s135 + $0x20] sm:$0xff] %vm987, %v975
        %993 = vst.msk [vmem:[%s135 + $0x28] sm:$0xff] %vm987, %v976
        %994 = vst.msk [vmem:[%s135 + $0x30] sm:$0xff] %vm987, %v977
        %995 = vst.msk [vmem:[%s135 + $0x38] sm:$0xff] %vm987, %v978
        %996 = vst.msk [vmem:[%s135 + $0x40] sm:$0xff] %vm987, %v979
        %997 = vst.msk [vmem:[%s135 + $0x48] sm:$0xff] %vm987, %v980
        %998 = vst.msk [vmem:[%s135 + $0x50] sm:$0xff] %vm987, %v981
        %999 = vst.msk [vmem:[%s135 + $0x58] sm:$0xff] %vm987, %v982
        %1000 = vst.msk [vmem:[%s135 + $0x60] sm:$0xff] %vm987, %v983
        %1001 = vst.msk [vmem:[%s135 + $0x68] sm:$0xff] %vm987, %v984
        %1002 = vst.msk [vmem:[%s135 + $0x70] sm:$0xff] %vm987, %v985
        %1003 = vst.msk [vmem:[%s135 + $0x78] sm:$0xff] %vm987, %v986
        %s1004 = sand.u32 %s52, 1
        %s1005 = scalar_lea.sflag [#allocation5], %s1004
        %s1006 = sand.u32 %s52, 1
        %s1007 = smul.addr %s1006, 128
        %s1008 = scalar_lea.vmem [#allocation6], %s1007
        // Predicated region
        $region29: #{tpu_custom_call.1} parent=23 // pred_check
          %p1009 = pneg %p62
        $region30: #{tpu_custom_call.1} parent=23 // pred_check_branch
          %1011 = sbr.rel (%p1009) target = $region32
        $region31: #{tpu_custom_call.1} parent=23 // pred_region
          %s1012 = smul.u32 4, %s18
          %s1014 = ssub.s32 2048, 2048
          %1015 = vsyncadd %s1005, %s1014
          %s1016 = smul.addr %s1012, 4
          %s1017 = smul.addr %s1016, 128
          %s1018 = scalar_lea.hbm %s1, %s1017
          %s1019 = sshll.u32 %s1008, 4
          %s1020 = int_to_ptr.vmem [resolvable:$true] %s1019
          %1025 = dma.vmem_to_hbm [thread:$0]  %s1020, 2048, %s1018, %s1005, 128, 128, 8
        $region32: #{tpu_custom_call.1} parent=23 // pred_fallthru
          _
      $region24: #{tpu_custom_call.1} parent=5 // pred_fallthru
        _
      %p1026 = scmp.le.s32.totalorder 2, %s13
      // Predicated region
      $region33: #{tpu_custom_call.1} parent=5 // pred_check
        %p1027 = pneg %p1026
      $region34: #{tpu_custom_call.1} parent=5 // pred_check_branch
        %1029 = sbr.rel (%p1027) target = $region36
      $region35: #{tpu_custom_call.1} parent=5 // pred_region
        %s1030 = ssub.s32 %s13, 2
        // Predicated region
        $region37: #{tpu_custom_call.1} parent=35 // pred_check
          %p1031 = pneg %p68
        $region38: #{tpu_custom_call.1} parent=35 // pred_check_branch
          %1033 = sbr.rel (%p1031) target = $region40
        $region39: #{tpu_custom_call.1} parent=35 // pred_region
          %s1034 = sand.u32 %s53, 1
          %s1035 = scalar_lea.sflag [#allocation5], %s1034
          %s1036 = sand.u32 %s53, 1
          %s1037 = smul.addr %s1036, 128
          %s1038 = scalar_lea.vmem [#allocation6], %s1037
          %1039 = dma.done %s1035, 2048
        $region40: #{tpu_custom_call.1} parent=35 // pred_fallthru
          _
      $region36: #{tpu_custom_call.1} parent=5 // pred_fallthru
        _
    $region6: #{tpu_custom_call.1} parent=1 // loop_footer
      %s17 = sadd.s32 1, %s13
    $region7: #{tpu_custom_call.1} parent=1 // loop_footer_branch
      %12 = sbr.rel target = $region3
    $region8: #{tpu_custom_call.1} parent=1 // loop_exit
      _
    %1040 = vsyncpa [#allocation4], 1
    %s1041 = scalar_lea.sflag [#allocation4], 1
    %1042 = vsyncpa %s1041, 1
    %1043 = vsyncpa [#allocation5], 1
    %s1044 = scalar_lea.sflag [#allocation5], 1
    %1045 = vsyncpa %s1044, 1

</llo_original>
